<compile_context>
chip_gen: v5e
topology: v5e:2x2
jax: 0.10.0
libtpu: 0.0.40
codegen_flags: <defaults>
</compile_context>

<pallas_src>
import functools

import jax
import jax.numpy as jnp
from jax.experimental import pallas as pl
from jax.experimental.pallas import tpu as pltpu

EPS = 1e-5


def _round_up(x, m):
    return (x + m - 1) // m * m


def _pick_rows_per_tile(R, Wo, C1, C2, budget_bytes=10 << 20, max_rows=None):
    """Largest divisor of R whose (double-buffered, padded) blocks fit budget."""
    wo_p = _round_up(Wo, 8)
    per_row = 4 * (2 * wo_p * _round_up(2 * C1, 128)      # x1 block (taps)
                   + wo_p * _round_up(C2, 128)            # x2 block
                   + wo_p * _round_up(C1 + C2, 128))      # out block
    best = 1
    for tr in range(1, R + 1):
        if R % tr:
            continue
        if max_rows is not None and tr > max_rows:
            continue
        if 2 * tr * per_row <= budget_bytes:               # x2 for double buffering
            best = tr
    return best


def _pool_cat_bn_kernel(x1_ref, x2_ref, gamma_ref, beta_ref, o_ref,
                        acc_ref, sb_ref, *, inv_count):
    # x1_ref : (TR, 2, Wo, 2*C1)  NHWC view with (h-parity, w-parity) exposed
    # x2_ref : (TR, Wo, C2)
    # gamma_ref, beta_ref : (1, C)
    # o_ref  : (TR, Wo, C)
    # acc_ref: (2, C) VMEM scratch  -- [sum ; sumsq] of raw tap-sum / x2
    # sb_ref : (2, C) VMEM scratch  -- [effective scale ; bias]
    C1 = x1_ref.shape[-1] // 2
    C = o_ref.shape[-1]

    p = pl.program_id(0)            # 0 = statistics sweep, 1 = normalize sweep
    r = pl.program_id(1)
    last_r = pl.num_programs(1) - 1

    # Raw 2x2 tap sum (= 4 * avg-pooled value); the 0.25 is folded into the
    # per-channel BN scale so no per-element multiply is needed.
    s = (x1_ref[:, 0, :, :C1] + x1_ref[:, 0, :, C1:]
         + x1_ref[:, 1, :, :C1] + x1_ref[:, 1, :, C1:])        # (TR, Wo, C1)
    x2 = x2_ref[...]                                           # (TR, Wo, C2)

    @pl.when(jnp.logical_and(p == 0, r == 0))
    def _init():
        acc_ref[...] = jnp.zeros_like(acc_ref)

    @pl.when(p == 0)
    def _accumulate():
        s_sum = jnp.sum(jnp.sum(s, axis=0), axis=0, keepdims=True)        # (1, C1)
        s_ssq = jnp.sum(jnp.sum(s * s, axis=0), axis=0, keepdims=True)
        x_sum = jnp.sum(jnp.sum(x2, axis=0), axis=0, keepdims=True)       # (1, C2)
        x_ssq = jnp.sum(jnp.sum(x2 * x2, axis=0), axis=0, keepdims=True)
        acc_ref[0:1, :C1] += s_sum
        acc_ref[1:2, :C1] += s_ssq
        acc_ref[0:1, C1:] += x_sum
        acc_ref[1:2, C1:] += x_ssq

    @pl.when(jnp.logical_and(p == 0, r == last_r))
    def _finalize_stats():
        # Fold the 1/4 pooling factor into the stats of the pooled channels.
        ch = jax.lax.broadcasted_iota(jnp.int32, (1, C), 1)
        pf = jnp.where(ch < C1, 0.25, 1.0).astype(jnp.float32)
        mean = acc_ref[0:1, :] * (pf * inv_count)
        ex2 = acc_ref[1:2, :] * (pf * pf * inv_count)
        var = ex2 - mean * mean                     # biased (training-mode) var
        scale = gamma_ref[...] * jax.lax.rsqrt(var + EPS)
        sb_ref[0:1, :] = scale * pf                 # applied to raw tap-sum / x2
        sb_ref[1:2, :] = beta_ref[...] - mean * scale

    @pl.when(p == 1)
    def _normalize():
        scale = sb_ref[0:1, :]
        bias = sb_ref[1:2, :]
        o_ref[:, :, :C1] = s * scale[:, :C1] + bias[:, :C1]
        o_ref[:, :, C1:] = x2 * scale[:, C1:] + bias[:, C1:]


@functools.partial(jax.jit, static_argnames=("max_rows_per_tile",))
def forward(x139, x147, gamma, beta, *, max_rows_per_tile=None):
    N, C1, H, W = x139.shape
    Ho, Wo = H // 2, W // 2
    C2 = x147.shape[1]
    C = C1 + C2
    R = N * Ho                       # kernel "rows" = output image rows

    # One NCHW->NHWC relayout per input; the subsequent reshapes are views.
    x1 = jnp.transpose(x139, (0, 2, 3, 1)).reshape(R, 2, Wo, 2 * C1)
    x2 = jnp.transpose(x147, (0, 2, 3, 1)).reshape(R, Wo, C2)

    tr = _pick_rows_per_tile(R, Wo, C1, C2, max_rows=max_rows_per_tile)
    grid = (2, R // tr)

    kernel = functools.partial(_pool_cat_bn_kernel,
                               inv_count=1.0 / float(R * Wo))

    out = pl.pallas_call(
        kernel,
        out_shape=jax.ShapeDtypeStruct((R, Wo, C), jnp.float32),
        grid_spec=pltpu.PrefetchScalarGridSpec(
            num_scalar_prefetch=0,
            grid=grid,
            in_specs=[
                pl.BlockSpec((tr, 2, Wo, 2 * C1), lambda p, r: (r, 0, 0, 0)),
                pl.BlockSpec((tr, Wo, C2), lambda p, r: (r, 0, 0)),
                pl.BlockSpec((1, C), lambda p, r: (0, 0)),
                pl.BlockSpec((1, C), lambda p, r: (0, 0)),
            ],
            # r*p: output block stays parked (no HBM writeback) during the
            # statistics sweep, cycles normally during the normalize sweep.
            out_specs=pl.BlockSpec((tr, Wo, C), lambda p, r: (r * p, 0, 0)),
            scratch_shapes=[pltpu.VMEM((2, C), jnp.float32),   # sum / sumsq
                            pltpu.VMEM((2, C), jnp.float32)],  # scale / bias
        ),
        compiler_params=pltpu.CompilerParams(
            dimension_semantics=("arbitrary", "arbitrary"),
            vmem_limit_bytes=32 * 1024 * 1024),
    )(x1, x2, gamma.reshape(1, C), beta.reshape(1, C))

    # Back to NCHW to match the PyTorch module.
    return jnp.transpose(out.reshape(N, Ho, Wo, C), (0, 3, 1, 2))


def _reference(x1, x2, g, b):
    n, c1, h, w = x1.shape
    pooled = x1.reshape(n, c1, h // 2, 2, w // 2, 2).mean(axis=(3, 5))
    cat = jnp.concatenate([pooled, x2], axis=1)
    mean = cat.mean(axis=(0, 2, 3), keepdims=True)
    var = ((cat - mean) ** 2).mean(axis=(0, 2, 3), keepdims=True)
    y = (cat - mean) / jnp.sqrt(var + EPS)
    return y * g.reshape(1, -1, 1, 1) + b.reshape(1, -1, 1, 1)


if __name__ == "__main__":
    key = jax.random.PRNGKey(0)
    k1, k2, k3, k4 = jax.random.split(key, 4)

    # Shapes from the PyTorch module spec.
    N, C1, H, W = 1, 256, 28, 28
    C2 = 32
    x139 = jax.random.normal(k1, (N, C1, H, W), dtype=jnp.float32)
    x147 = jax.random.normal(k2, (N, C2, H // 2, W // 2), dtype=jnp.float32)
    gamma = 1.0 + 0.1 * jax.random.normal(k3, (C1 + C2,), dtype=jnp.float32)
    beta = 0.1 * jax.random.normal(k4, (C1 + C2,), dtype=jnp.float32)

    out = forward(x139, x147, gamma, beta)
    jax.block_until_ready(out)
    ref = _reference(x139, x147, gamma, beta)
    assert out.shape == (N, C1 + C2, H // 2, W // 2)
    assert jnp.allclose(out, ref, atol=1e-3, rtol=1e-3)

    # Second case: forces several row tiles to exercise the two-sweep
    # accumulate / normalize grid path.
    xb1 = jax.random.normal(k1, (2, C1, 32, 32), dtype=jnp.float32)
    xb2 = jax.random.normal(k2, (2, C2, 16, 16), dtype=jnp.float32)
    outb = forward(xb1, xb2, gamma, beta, max_rows_per_tile=8)
    jax.block_until_ready(outb)
    refb = _reference(xb1, xb2, gamma, beta)
    assert outb.shape == (2, C1 + C2, 16, 16)
    assert jnp.allclose(outb, refb, atol=1e-3, rtol=1e-3)

    print("KERNEL_OK")
</pallas_src>

<mosaic_0001>
module attributes {stable_mosaic.version = 11 : i64} {
  func.func @_pool_cat_bn_kernel(%arg0: i32, %arg1: i32, %arg2: memref<14x2x14x512xf32, #tpu.memory_space<vmem>>, %arg3: memref<14x14x32xf32, #tpu.memory_space<vmem>>, %arg4: memref<1x288xf32, #tpu.memory_space<vmem>>, %arg5: memref<1x288xf32, #tpu.memory_space<vmem>>, %arg6: memref<14x14x288xf32, #tpu.memory_space<vmem>>, %arg7: memref<2x288xf32, #tpu.memory_space<vmem>>, %arg8: memref<2x288xf32, #tpu.memory_space<vmem>>) attributes {dimension_semantics = [#tpu.dimension_semantics<arbitrary>, #tpu.dimension_semantics<arbitrary>], iteration_bounds = array<i64: 2, 1>, scalar_prefetch = 0 : i64, scratch_operands = 2 : i64, tpu.core_type = #tpu.core_type<tc>, window_params = [{transform_indices = @transform_0, window_bounds = array<i64: 14, 2, 14, 512>}, {transform_indices = @transform_1, window_bounds = array<i64: 14, 14, 32>}, {pipeline_mode = #tpu.pipeline_mode<synchronous>, transform_indices = @transform_2, window_bounds = array<i64: 1, 288>}, {pipeline_mode = #tpu.pipeline_mode<synchronous>, transform_indices = @transform_3, window_bounds = array<i64: 1, 288>}, {transform_indices = @transform_4, window_bounds = array<i64: 14, 14, 288>}]} {
    %c0 = arith.constant 0 : index
    %c0_0 = arith.constant 0 : index
    %c0_1 = arith.constant 0 : index
    %c0_2 = arith.constant 0 : index
    %0 = vector.load %arg2[%c0, %c0_0, %c0_1, %c0_2] : memref<14x2x14x512xf32, #tpu.memory_space<vmem>>, vector<14x1x14x256xf32>
    %1 = vector.shape_cast %0 : vector<14x1x14x256xf32> to vector<14x14x256xf32>
    %c0_3 = arith.constant 0 : index
    %c0_4 = arith.constant 0 : index
    %c0_5 = arith.constant 0 : index
    %c256 = arith.constant 256 : index
    %2 = vector.load %arg2[%c0_3, %c0_4, %c0_5, %c256] : memref<14x2x14x512xf32, #tpu.memory_space<vmem>>, vector<14x1x14x256xf32>
    %3 = vector.shape_cast %2 : vector<14x1x14x256xf32> to vector<14x14x256xf32>
    %4 = arith.addf %1, %3 : vector<14x14x256xf32>
    %c0_6 = arith.constant 0 : index
    %c1 = arith.constant 1 : index
    %c0_7 = arith.constant 0 : index
    %c0_8 = arith.constant 0 : index
    %5 = vector.load %arg2[%c0_6, %c1, %c0_7, %c0_8] : memref<14x2x14x512xf32, #tpu.memory_space<vmem>>, vector<14x1x14x256xf32>
    %6 = vector.shape_cast %5 : vector<14x1x14x256xf32> to vector<14x14x256xf32>
    %7 = arith.addf %4, %6 : vector<14x14x256xf32>
    %c0_9 = arith.constant 0 : index
    %c1_10 = arith.constant 1 : index
    %c0_11 = arith.constant 0 : index
    %c256_12 = arith.constant 256 : index
    %8 = vector.load %arg2[%c0_9, %c1_10, %c0_11, %c256_12] : memref<14x2x14x512xf32, #tpu.memory_space<vmem>>, vector<14x1x14x256xf32>
    %9 = vector.shape_cast %8 : vector<14x1x14x256xf32> to vector<14x14x256xf32>
    %10 = arith.addf %7, %9 : vector<14x14x256xf32>
    %c0_13 = arith.constant 0 : index
    %c0_14 = arith.constant 0 : index
    %c0_15 = arith.constant 0 : index
    %11 = vector.load %arg3[%c0_13, %c0_14, %c0_15] : memref<14x14x32xf32, #tpu.memory_space<vmem>>, vector<14x14x32xf32>
    %c0_i32 = arith.constant 0 : i32
    %12 = arith.cmpi eq, %arg0, %c0_i32 : i32
    %c0_i32_16 = arith.constant 0 : i32
    %13 = arith.cmpi eq, %arg1, %c0_i32_16 : i32
    %14 = arith.andi %12, %13 : i1
    %15 = arith.extui %14 : i1 to i32
    %c0_i32_17 = arith.constant 0 : i32
    %16 = arith.cmpi ne, %15, %c0_i32_17 : i32
    scf.if %16 {
      %cst = arith.constant 0.000000e+00 : f32
      %28 = vector.broadcast %cst : f32 to vector<2x288xf32>
      %c0_24 = arith.constant 0 : index
      %c0_25 = arith.constant 0 : index
      %29 = vector.load %arg7[%c0_24, %c0_25] : memref<2x288xf32, #tpu.memory_space<vmem>>, vector<2x288xf32>
      tpu.vector_store %arg7[%c0_24, %c0_25], %28 {strides = array<i32>} : memref<2x288xf32, #tpu.memory_space<vmem>>, vector<2x288xf32>,
    } else {
    }
    %c0_i32_18 = arith.constant 0 : i32
    %17 = arith.cmpi eq, %arg0, %c0_i32_18 : i32
    %18 = arith.extui %17 : i1 to i32
    %c0_i32_19 = arith.constant 0 : i32
    %19 = arith.cmpi ne, %18, %c0_i32_19 : i32
    scf.if %19 {
      %cst = arith.constant dense<0.000000e+00> : vector<14x256xf32>
      %28 = vector.multi_reduction <add>, %10, %cst [0] : vector<14x14x256xf32> to vector<14x256xf32>
      %cst_24 = arith.constant dense<0.000000e+00> : vector<256xf32>
      %29 = vector.multi_reduction <add>, %28, %cst_24 [0] : vector<14x256xf32> to vector<256xf32>
      %30 = vector.shape_cast %29 : vector<256xf32> to vector<1x256xf32>
      %31 = arith.mulf %10, %10 : vector<14x14x256xf32>
      %cst_25 = arith.constant dense<0.000000e+00> : vector<14x256xf32>
      %32 = vector.multi_reduction <add>, %31, %cst_25 [0] : vector<14x14x256xf32> to vector<14x256xf32>
      %cst_26 = arith.constant dense<0.000000e+00> : vector<256xf32>
      %33 = vector.multi_reduction <add>, %32, %cst_26 [0] : vector<14x256xf32> to vector<256xf32>
      %34 = vector.shape_cast %33 : vector<256xf32> to vector<1x256xf32>
      %cst_27 = arith.constant dense<0.000000e+00> : vector<14x32xf32>
      %35 = vector.multi_reduction <add>, %11, %cst_27 [0] : vector<14x14x32xf32> to vector<14x32xf32>
      %cst_28 = arith.constant dense<0.000000e+00> : vector<32xf32>
      %36 = vector.multi_reduction <add>, %35, %cst_28 [0] : vector<14x32xf32> to vector<32xf32>
      %37 = vector.shape_cast %36 : vector<32xf32> to vector<1x32xf32>
      %38 = arith.mulf %11, %11 : vector<14x14x32xf32>
      %cst_29 = arith.constant dense<0.000000e+00> : vector<14x32xf32>
      %39 = vector.multi_reduction <add>, %38, %cst_29 [0] : vector<14x14x32xf32> to vector<14x32xf32>
      %cst_30 = arith.constant dense<0.000000e+00> : vector<32xf32>
      %40 = vector.multi_reduction <add>, %39, %cst_30 [0] : vector<14x32xf32> to vector<32xf32>
      %41 = vector.shape_cast %40 : vector<32xf32> to vector<1x32xf32>
      %c0_31 = arith.constant 0 : index
      %c0_32 = arith.constant 0 : index
      %42 = vector.load %arg7[%c0_31, %c0_32] : memref<2x288xf32, #tpu.memory_space<vmem>>, vector<1x256xf32>
      %43 = arith.addf %42, %30 : vector<1x256xf32>
      %c0_33 = arith.constant 0 : index
      %c0_34 = arith.constant 0 : index
      %44 = vector.load %arg7[%c0_33, %c0_34] : memref<2x288xf32, #tpu.memory_space<vmem>>, vector<1x256xf32>
      tpu.vector_store %arg7[%c0_33, %c0_34], %43 {strides = array<i32>} : memref<2x288xf32, #tpu.memory_space<vmem>>, vector<1x256xf32>,
      %c1_35 = arith.constant 1 : index
      %c0_36 = arith.constant 0 : index
      %45 = vector.load %arg7[%c1_35, %c0_36] : memref<2x288xf32, #tpu.memory_space<vmem>>, vector<1x256xf32>
      %46 = arith.addf %45, %34 : vector<1x256xf32>
      %c1_37 = arith.constant 1 : index
      %c0_38 = arith.constant 0 : index
      %47 = vector.load %arg7[%c1_37, %c0_38] : memref<2x288xf32, #tpu.memory_space<vmem>>, vector<1x256xf32>
      tpu.vector_store %arg7[%c1_37, %c0_38], %46 {strides = array<i32>} : memref<2x288xf32, #tpu.memory_space<vmem>>, vector<1x256xf32>,
      %c0_39 = arith.constant 0 : index
      %c256_40 = arith.constant 256 : index
      %48 = vector.load %arg7[%c0_39, %c256_40] : memref<2x288xf32, #tpu.memory_space<vmem>>, vector<1x32xf32>
      %49 = arith.addf %48, %37 : vector<1x32xf32>
      %c0_41 = arith.constant 0 : index
      %c256_42 = arith.constant 256 : index
      %50 = vector.load %arg7[%c0_41, %c256_42] : memref<2x288xf32, #tpu.memory_space<vmem>>, vector<1x32xf32>
      tpu.vector_store %arg7[%c0_41, %c256_42], %49 {strides = array<i32>} : memref<2x288xf32, #tpu.memory_space<vmem>>, vector<1x32xf32>,
      %c1_43 = arith.constant 1 : index
      %c256_44 = arith.constant 256 : index
      %51 = vector.load %arg7[%c1_43, %c256_44] : memref<2x288xf32, #tpu.memory_space<vmem>>, vector<1x32xf32>
      %52 = arith.addf %51, %41 : vector<1x32xf32>
      %c1_45 = arith.constant 1 : index
      %c256_46 = arith.constant 256 : index
      %53 = vector.load %arg7[%c1_45, %c256_46] : memref<2x288xf32, #tpu.memory_space<vmem>>, vector<1x32xf32>
      tpu.vector_store %arg7[%c1_45, %c256_46], %52 {strides = array<i32>} : memref<2x288xf32, #tpu.memory_space<vmem>>, vector<1x32xf32>,
    } else {
    }
    %c0_i32_20 = arith.constant 0 : i32
    %20 = arith.cmpi eq, %arg0, %c0_i32_20 : i32
    %c0_i32_21 = arith.constant 0 : i32
    %21 = arith.cmpi eq, %arg1, %c0_i32_21 : i32
    %22 = arith.andi %20, %21 : i1
    %23 = arith.extui %22 : i1 to i32
    %c0_i32_22 = arith.constant 0 : i32
    %24 = arith.cmpi ne, %23, %c0_i32_22 : i32
    scf.if %24 {
      %28 = tpu.iota {dimensions = array<i32: 1>} : vector<1x288xi32>
      %c256_i32 = arith.constant 256 : i32
      %29 = vector.broadcast %c256_i32 : i32 to vector<1x288xi32>
      %30 = arith.cmpi slt, %28, %29 : vector<1x288xi32>
      %cst = arith.constant 2.500000e-01 : f32
      %cst_24 = arith.constant 1.000000e+00 : f32
      %31 = vector.broadcast %cst : f32 to vector<1x288xf32>
      %32 = vector.broadcast %cst_24 : f32 to vector<1x288xf32>
      %33 = arith.select %30, %31, %32 : vector<1x288xi1>, vector<1x288xf32>
      %c0_25 = arith.constant 0 : index
      %c0_26 = arith.constant 0 : index
      %34 = vector.load %arg7[%c0_25, %c0_26] : memref<2x288xf32, #tpu.memory_space<vmem>>, vector<1x288xf32>
      %cst_27 = arith.constant 0.00510204071 : f32
      %35 = vector.broadcast %cst_27 : f32 to vector<1x288xf32>
      %36 = arith.mulf %33, %35 : vector<1x288xf32>
      %37 = arith.mulf %34, %36 : vector<1x288xf32>
      %c1_28 = arith.constant 1 : index
      %c0_29 = arith.constant 0 : index
      %38 = vector.load %arg7[%c1_28, %c0_29] : memref<2x288xf32, #tpu.memory_space<vmem>>, vector<1x288xf32>
      %39 = arith.mulf %33, %33 : vector<1x288xf32>
      %cst_30 = arith.constant 0.00510204071 : f32
      %40 = vector.broadcast %cst_30 : f32 to vector<1x288xf32>
      %41 = arith.mulf %39, %40 : vector<1x288xf32>
      %42 = arith.mulf %38, %41 : vector<1x288xf32>
      %43 = arith.mulf %37, %37 : vector<1x288xf32>
      %44 = arith.subf %42, %43 : vector<1x288xf32>
      %c0_31 = arith.constant 0 : index
      %c0_32 = arith.constant 0 : index
      %45 = vector.load %arg4[%c0_31, %c0_32] : memref<1x288xf32, #tpu.memory_space<vmem>>, vector<1x288xf32>
      %cst_33 = arith.constant 9.99999974E-6 : f32
      %46 = vector.broadcast %cst_33 : f32 to vector<1x288xf32>
      %47 = arith.addf %44, %46 : vector<1x288xf32>
      %48 = math.rsqrt %47 : vector<1x288xf32>
      %49 = arith.mulf %45, %48 : vector<1x288xf32>
      %50 = arith.mulf %49, %33 : vector<1x288xf32>
      %c0_34 = arith.constant 0 : index
      %c0_35 = arith.constant 0 : index
      %51 = vector.load %arg8[%c0_34, %c0_35] : memref<2x288xf32, #tpu.memory_space<vmem>>, vector<1x288xf32>
      tpu.vector_store %arg8[%c0_34, %c0_35], %50 {strides = array<i32>} : memref<2x288xf32, #tpu.memory_space<vmem>>, vector<1x288xf32>,
      %c0_36 = arith.constant 0 : index
      %c0_37 = arith.constant 0 : index
      %52 = vector.load %arg5[%c0_36, %c0_37] : memref<1x288xf32, #tpu.memory_space<vmem>>, vector<1x288xf32>
      %53 = arith.mulf %37, %49 : vector<1x288xf32>
      %54 = arith.subf %52, %53 : vector<1x288xf32>
      %c1_38 = arith.constant 1 : index
      %c0_39 = arith.constant 0 : index
      %55 = vector.load %arg8[%c1_38, %c0_39] : memref<2x288xf32, #tpu.memory_space<vmem>>, vector<1x288xf32>
      tpu.vector_store %arg8[%c1_38, %c0_39], %54 {strides = array<i32>} : memref<2x288xf32, #tpu.memory_space<vmem>>, vector<1x288xf32>,
    } else {
    }
    %c1_i32 = arith.constant 1 : i32
    %25 = arith.cmpi eq, %arg0, %c1_i32 : i32
    %26 = arith.extui %25 : i1 to i32
    %c0_i32_23 = arith.constant 0 : i32
    %27 = arith.cmpi ne, %26, %c0_i32_23 : i32
    scf.if %27 {
      %c0_24 = arith.constant 0 : index
      %c0_25 = arith.constant 0 : index
      %28 = vector.load %arg8[%c0_24, %c0_25] : memref<2x288xf32, #tpu.memory_space<vmem>>, vector<1x288xf32>
      %c1_26 = arith.constant 1 : index
      %c0_27 = arith.constant 0 : index
      %29 = vector.load %arg8[%c1_26, %c0_27] : memref<2x288xf32, #tpu.memory_space<vmem>>, vector<1x288xf32>
      %30 = vector.extract_strided_slice %28 {offsets = [0, 0], sizes = [1, 256], strides = [1, 1]} : vector<1x288xf32> to vector<1x256xf32>
      %31 = vector.shape_cast %30 : vector<1x256xf32> to vector<1x1x256xf32>
      %32 = vector.broadcast %31 : vector<1x1x256xf32> to vector<14x14x256xf32>
      %33 = arith.mulf %10, %32 : vector<14x14x256xf32>
      %34 = vector.extract_strided_slice %29 {offsets = [0, 0], sizes = [1, 256], strides = [1, 1]} : vector<1x288xf32> to vector<1x256xf32>
      %35 = vector.shape_cast %34 : vector<1x256xf32> to vector<1x1x256xf32>
      %36 = vector.broadcast %35 : vector<1x1x256xf32> to vector<14x14x256xf32>
      %37 = arith.addf %33, %36 : vector<14x14x256xf32>
      %c0_28 = arith.constant 0 : index
      %c0_29 = arith.constant 0 : index
      %c0_30 = arith.constant 0 : index
      %38 = vector.load %arg6[%c0_28, %c0_29, %c0_30] : memref<14x14x288xf32, #tpu.memory_space<vmem>>, vector<14x14x256xf32>
      tpu.vector_store %arg6[%c0_28, %c0_29, %c0_30], %37 {strides = array<i32>} : memref<14x14x288xf32, #tpu.memory_space<vmem>>, vector<14x14x256xf32>,
      %39 = vector.extract_strided_slice %28 {offsets = [0, 256], sizes = [1, 32], strides = [1, 1]} : vector<1x288xf32> to vector<1x32xf32>
      %40 = vector.shape_cast %39 : vector<1x32xf32> to vector<1x1x32xf32>
      %41 = vector.broadcast %40 : vector<1x1x32xf32> to vector<14x14x32xf32>
      %42 = arith.mulf %11, %41 : vector<14x14x32xf32>
      %43 = vector.extract_strided_slice %29 {offsets = [0, 256], sizes = [1, 32], strides = [1, 1]} : vector<1x288xf32> to vector<1x32xf32>
      %44 = vector.shape_cast %43 : vector<1x32xf32> to vector<1x1x32xf32>
      %45 = vector.broadcast %44 : vector<1x1x32xf32> to vector<14x14x32xf32>
      %46 = arith.addf %42, %45 : vector<14x14x32xf32>
      %c0_31 = arith.constant 0 : index
      %c0_32 = arith.constant 0 : index
      %c256_33 = arith.constant 256 : index
      %47 = vector.load %arg6[%c0_31, %c0_32, %c256_33] : memref<14x14x288xf32, #tpu.memory_space<vmem>>, vector<14x14x32xf32>
      tpu.vector_store %arg6[%c0_31, %c0_32, %c256_33], %46 {strides = array<i32>} : memref<14x14x288xf32, #tpu.memory_space<vmem>>, vector<14x14x32xf32>,
    } else {
    }
    return
  }
  func.func @transform_0(%arg0: i32, %arg1: i32) -> (i32, i32, i32, i32) {
    %c0_i32 = arith.constant 0 : i32
    %c0_i32_0 = arith.constant 0 : i32
    %c0_i32_1 = arith.constant 0 : i32
    %c0_i32_2 = arith.constant 0 : i32
    return %arg1, %c0_i32, %c0_i32_0, %c0_i32_1 : i32, i32, i32, i32
  }
  func.func @transform_1(%arg0: i32, %arg1: i32) -> (i32, i32, i32) {
    %c0_i32 = arith.constant 0 : i32
    %c0_i32_0 = arith.constant 0 : i32
    %c0_i32_1 = arith.constant 0 : i32
    return %arg1, %c0_i32, %c0_i32_0 : i32, i32, i32
  }
  func.func @transform_2(%arg0: i32, %arg1: i32) -> (i32, i32) {
    %c0_i32 = arith.constant 0 : i32
    %c0_i32_0 = arith.constant 0 : i32
    %c0_i32_1 = arith.constant 0 : i32
    return %c0_i32, %c0_i32_0 : i32, i32
  }
  func.func @transform_3(%arg0: i32, %arg1: i32) -> (i32, i32) {
    %c0_i32 = arith.constant 0 : i32
    %c0_i32_0 = arith.constant 0 : i32
    %c0_i32_1 = arith.constant 0 : i32
    return %c0_i32, %c0_i32_0 : i32, i32
  }
  func.func @transform_4(%arg0: i32, %arg1: i32) -> (i32, i32, i32) {
    %0 = arith.muli %arg1, %arg0 : i32
    %c0_i32 = arith.constant 0 : i32
    %c0_i32_0 = arith.constant 0 : i32
    %c0_i32_1 = arith.constant 0 : i32
    return %0, %c0_i32, %c0_i32_0 : i32, i32, i32
  }
}

</mosaic_0001>

<llo_original>
// kernel: forward.1
$region0: #{forward.1}
  #allocation0 [shape = 'u32[]', space=smem, size = 0x4, offset = 0x4, fixed_abs, tag = 'smem constant byte address 0x4 - core index']
  #allocation1 [shape = 'u32[72,128]{1,0:T(1,128)}', space=vmem, size = 0x9000, scoped, tag = 'internal scratch']
  #allocation2 [shape = 'f32[2,288]{1,0:T(2,128)}', space=vmem, size = 0xc00, scoped, tag = 'scratch operand']
  #allocation3 [shape = 'f32[2,288]{1,0:T(2,128)}', space=vmem, size = 0xc00, scoped, tag = 'scratch operand']
  %s0 = inlined_call_operand.vmem [shape: f32[14,2,14,512], index: 0, kind: input, shape index: {}]
  %s1 = inlined_call_operand.vmem [shape: f32[14,14,32], index: 1, kind: input, shape index: {}]
  %s2 = inlined_call_operand.vmem [shape: f32[1,288], index: 2, kind: input, shape index: {}]
  %s3 = inlined_call_operand.vmem [shape: f32[1,288], index: 3, kind: input, shape index: {}]
  %s4 = inlined_call_operand.vmem [shape: f32[14,14,288], index: 4, kind: output, shape index: {}]
  %s5 = sld [smem:[#allocation0]]
  $region65: #{forward.1} parent=0
    _
  %s7 = ssub.s32 1, %s5
  %s8 = scalar_select 0, %s7, %s5
  loop: start=0, step=1, limit=4
  $region2: #{forward.1} parent=0 // loop_pre_header
    _
  $region3: #{forward.1} parent=0 // loop_header
    %s10 = sphi 0, %s14
    %p11 = scmp.ge.s32.totalorder %s10, 4
    %s17 = sphi 0, %s29
    %s18 = sphi 0, %s25
    %s19 = sphi 0, %s17
    %s20 = sphi 0, %s18
    %s21 = sphi 0, %s19
    %s22 = sphi 0, %s20
    %s32 = sphi 0, %s34
    %s35 = sphi 0, %s32
    %s36 = sphi 0, %s35
    %s52 = sphi 0, %s36
    %s58 = sphi 0, %s60
    %s61 = sphi 0, %s58
    %s62 = sphi 0, %s61
    %s78 = sphi 0, %s62
    %s82 = sphi 0, %s82
    %s84 = sphi 0, %s82
    %s85 = sphi 0, %s84
    %s99 = sphi 0, %s85
    %s103 = sphi 0, %s103
    %s105 = sphi 0, %s103
    %s106 = sphi 0, %s105
    %s120 = sphi 0, %s106
    %s128 = sphi 0, %s130
    %s131 = sphi 0, %s128
    %s132 = sphi 0, %s131
    %s148 = sphi 0, %s132
  $region4: #{forward.1} parent=0 // loop_header_branch
    %13 = sbr.rel (%p11) target = $region8
  $region5: #{forward.1} parent=0 // loop_body
    %s15 = ssub.s32 %s10, 1
    %s16 = ssub.s32 %s10, 2
    %s23 = sadd.s32 1, %s18
    %p24 = scmp.ge.s32.totalorder %s23, 1
    %s25 = scalar_select %p24, 0, %s23
    %s26 = sadd.s32 1, %s17
    %s27 = scalar_select %p24, %s26, %s17
    %p28 = scmp.ge.s32.totalorder %s27, 2
    %s29 = scalar_select %p28, 0, %s27
    %s30 = ssub.s32 %s18, %s25
    %p31 = scmp.eq.s32.totalorder %s30, 0
    %s33 = sadd.s32 %s32, 1
    %s34 = scalar_select %p31, %s32, %s33
    %p37 = pneg %p31
    %p38 = scmp.eq.s32.totalorder %s10, 1
    %p39 = por %p37, %p38
    %p40 = scmp.ne.s32.totalorder %s32, %s35
    %p41 = scmp.eq.s32.totalorder %s10, 0
    %p42 = por %p40, %p41
    %p43 = scmp.ne.s32.totalorder %s32, %s35
    %p44 = scmp.eq.s32.totalorder %s15, 1
    %p45 = por %p43, %p44
    %p46 = scmp.ne.s32.totalorder %s35, %s36
    %p47 = scmp.eq.s32.totalorder %s15, 0
    %p48 = por %p46, %p47
    %p49 = scmp.ne.s32.totalorder %s35, %s36
    %p50 = scmp.eq.s32.totalorder %s16, 1
    %p51 = por %p49, %p50
    %p53 = scmp.ne.s32.totalorder %s36, %s52
    %p54 = scmp.eq.s32.totalorder %s16, 0
    %p55 = por %p53, %p54
    %s56 = ssub.s32 %s18, %s25
    %p57 = scmp.eq.s32.totalorder %s56, 0
    %s59 = sadd.s32 %s58, 1
    %s60 = scalar_select %p57, %s58, %s59
    %p63 = pneg %p57
    %p64 = scmp.eq.s32.totalorder %s10, 1
    %p65 = por %p63, %p64
    %p66 = scmp.ne.s32.totalorder %s58, %s61
    %p67 = scmp.eq.s32.totalorder %s10, 0
    %p68 = por %p66, %p67
    %p69 = scmp.ne.s32.totalorder %s58, %s61
    %p70 = scmp.eq.s32.totalorder %s15, 1
    %p71 = por %p69, %p70
    %p72 = scmp.ne.s32.totalorder %s61, %s62
    %p73 = scmp.eq.s32.totalorder %s15, 0
    %p74 = por %p72, %p73
    %p75 = scmp.ne.s32.totalorder %s61, %s62
    %p76 = scmp.eq.s32.totalorder %s16, 1
    %p77 = por %p75, %p76
    %p79 = scmp.ne.s32.totalorder %s62, %s78
    %p80 = scmp.eq.s32.totalorder %s16, 0
    %p81 = por %p79, %p80
    %s83 = sadd.s32 %s82, 1
    %p86 = scmp.eq.s32.totalorder %s10, 1
    %p87 = scmp.ne.s32.totalorder %s82, %s84
    %p88 = scmp.eq.s32.totalorder %s10, 0
    %p89 = por %p87, %p88
    %p90 = scmp.ne.s32.totalorder %s82, %s84
    %p91 = scmp.eq.s32.totalorder %s15, 1
    %p92 = por %p90, %p91
    %p93 = scmp.ne.s32.totalorder %s84, %s85
    %p94 = scmp.eq.s32.totalorder %s15, 0
    %p95 = por %p93, %p94
    %p96 = scmp.ne.s32.totalorder %s84, %s85
    %p97 = scmp.eq.s32.totalorder %s16, 1
    %p98 = por %p96, %p97
    %p100 = scmp.ne.s32.totalorder %s85, %s99
    %p101 = scmp.eq.s32.totalorder %s16, 0
    %p102 = por %p100, %p101
    %s104 = sadd.s32 %s103, 1
    %p107 = scmp.eq.s32.totalorder %s10, 1
    %p108 = scmp.ne.s32.totalorder %s103, %s105
    %p109 = scmp.eq.s32.totalorder %s10, 0
    %p110 = por %p108, %p109
    %p111 = scmp.ne.s32.totalorder %s103, %s105
    %p112 = scmp.eq.s32.totalorder %s15, 1
    %p113 = por %p111, %p112
    %p114 = scmp.ne.s32.totalorder %s105, %s106
    %p115 = scmp.eq.s32.totalorder %s15, 0
    %p116 = por %p114, %p115
    %p117 = scmp.ne.s32.totalorder %s105, %s106
    %p118 = scmp.eq.s32.totalorder %s16, 1
    %p119 = por %p117, %p118
    %p121 = scmp.ne.s32.totalorder %s106, %s120
    %p122 = scmp.eq.s32.totalorder %s16, 0
    %p123 = por %p121, %p122
    %s124 = smul.u32 %s18, %s17
    %s125 = smul.u32 %s25, %s29
    %s126 = ssub.s32 %s124, %s125
    %p127 = scmp.eq.s32.totalorder %s126, 0
    %s129 = sadd.s32 %s128, 1
    %s130 = scalar_select %p127, %s128, %s129
    %p133 = pneg %p127
    %p134 = scmp.eq.s32.totalorder %s10, 1
    %p135 = por %p133, %p134
    %p136 = scmp.ne.s32.totalorder %s128, %s131
    %p137 = scmp.eq.s32.totalorder %s10, 0
    %p138 = por %p136, %p137
    %p139 = scmp.ne.s32.totalorder %s128, %s131
    %p140 = scmp.eq.s32.totalorder %s15, 1
    %p141 = por %p139, %p140
    %p142 = scmp.ne.s32.totalorder %s131, %s132
    %p143 = scmp.eq.s32.totalorder %s15, 0
    %p144 = por %p142, %p143
    %p145 = scmp.ne.s32.totalorder %s131, %s132
    %p146 = scmp.eq.s32.totalorder %s16, 1
    %p147 = por %p145, %p146
    %p149 = scmp.ne.s32.totalorder %s132, %s148
    %p150 = scmp.eq.s32.totalorder %s16, 0
    %p151 = por %p149, %p150
    %p152 = scmp.le.s32.totalorder 1, %s10
    %p153 = scmp.lt.s32.totalorder %s10, 3
    %p154 = pnand %p152, %p153
    %p155 = pneg %p154
    // Predicated region
    $region9: #{forward.1} parent=5 // pred_check
      _
    $region10: #{forward.1} parent=5 // pred_check_branch
      %157 = sbr.rel (%p154) target = $region12
    $region11: #{forward.1} parent=5 // pred_region
      %s158 = ssub.s32 %s10, 1
      // Predicated region
      $region13: #{forward.1} parent=11 // pred_check
        %p159 = pneg %p48
      $region14: #{forward.1} parent=11 // pred_check_branch
        %161 = sbr.rel (%p159) target = $region16
      $region15: #{forward.1} parent=11 // pred_region
        %s162 = smul.u32 14, %s20
        %p163 = scmp.lt.s32.totalorder %s162, 13
        %s164 = scalar_select %p163, %s162, 13
        %s165 = smul.addr %s164, 16
        %s166 = smul.addr %s165, 8
        %s167 = scalar_lea.vmem %s0, %s166
        %s168 = smul.u32 14, %s20
      $region16: #{forward.1} parent=11 // pred_fallthru
        _
      // Predicated region
      $region17: #{forward.1} parent=11 // pred_check
        %p169 = pneg %p74
      $region18: #{forward.1} parent=11 // pred_check_branch
        %171 = sbr.rel (%p169) target = $region20
      $region19: #{forward.1} parent=11 // pred_region
        %s172 = smul.u32 14, %s20
        %p173 = scmp.lt.s32.totalorder %s172, 13
        %s174 = scalar_select %p173, %s172, 13
        %s175 = smul.addr %s174, 2
        %s176 = smul.addr %s175, 8
        %s177 = scalar_lea.vmem %s1, %s176
        %s178 = smul.u32 14, %s20
      $region20: #{forward.1} parent=11 // pred_fallthru
        _
      // Predicated region
      $region21: #{forward.1} parent=11 // pred_check
        %p179 = pneg %p95
      $region22: #{forward.1} parent=11 // pred_check_branch
        %181 = sbr.rel (%p179) target = $region24
      $region23: #{forward.1} parent=11 // pred_region
        _
      $region24: #{forward.1} parent=11 // pred_fallthru
        _
      // Predicated region
      $region25: #{forward.1} parent=11 // pred_check
        %p182 = pneg %p116
      $region26: #{forward.1} parent=11 // pred_check_branch
        %184 = sbr.rel (%p182) target = $region28
      $region27: #{forward.1} parent=11 // pred_region
        _
      $region28: #{forward.1} parent=11 // pred_fallthru
        _
    $region12: #{forward.1} parent=5 // pred_fallthru
      _
    %p185 = scmp.lt.s32.totalorder %s10, 2
    // Predicated region
    $region29: #{forward.1} parent=5 // pred_check
      %p186 = pneg %p185
    $region30: #{forward.1} parent=5 // pred_check_branch
      %188 = sbr.rel (%p186) target = $region32
    $region31: #{forward.1} parent=5 // pred_region
      _
    $region32: #{forward.1} parent=5 // pred_fallthru
      _
    %p189 = scmp.le.s32.totalorder 1, %s10
    %p190 = scmp.lt.s32.totalorder %s10, 3
    %p191 = pnand %p189, %p190
    %p192 = pneg %p191
    // Predicated region
    $region33: #{forward.1} parent=5 // pred_check
      _
    $region34: #{forward.1} parent=5 // pred_check_branch
      %194 = sbr.rel (%p191) target = $region36
    $region35: #{forward.1} parent=5 // pred_region
      %s195 = ssub.s32 %s10, 1
      %s196 = smul.u32 14, %s20
      %p197 = scmp.lt.s32.totalorder %s196, 13
      %s198 = scalar_select %p197, %s196, 13
      %s199 = smul.addr %s198, 16
      %s200 = smul.addr %s199, 8
      %s201 = scalar_lea.vmem %s0, %s200
      %p202 = pneg %p48
      %p203 = pneg %p45
      %s204 = smul.u32 14, %s20
      %p205 = scmp.lt.s32.totalorder %s204, 13
      %s206 = scalar_select %p205, %s204, 13
      %s207 = smul.addr %s206, 2
      %s208 = smul.addr %s207, 8
      %s209 = scalar_lea.vmem %s1, %s208
      %p210 = pneg %p74
      %p211 = pneg %p71
      %p212 = pneg %p95
      %p213 = pneg %p92
      %p214 = pneg %p116
      %p215 = pneg %p113
      %p216 = pneg %p144
      %p217 = pneg %p141
      %s218 = smul.u32 %s20, %s19
      %s219 = smul.u32 14, %s218
      %p220 = scmp.lt.s32.totalorder %s219, 13
      %s221 = scalar_select %p220, %s219, 13
      %s222 = smul.addr %s221, 6
      %s223 = smul.addr %s222, 8
      %s224 = scalar_lea.vmem %s4, %s223
      %s225 = smul.u32 14, %s20
      %p226 = scmp.lt.s32.totalorder %s225, 13
      %s227 = scalar_select %p226, %s225, 13
      %s228 = smul.addr %s227, 16
      %s229 = smul.addr %s228, 8
      %s230 = scalar_lea.vmem %s0, %s229
      %s231 = smul.u32 14, %s20
      %s232 = smul.u32 14, %s20
      %p233 = scmp.lt.s32.totalorder %s232, 13
      %s234 = scalar_select %p233, %s232, 13
      %s235 = smul.addr %s234, 2
      %s236 = smul.addr %s235, 8
      %s237 = scalar_lea.vmem %s1, %s236
      %s238 = smul.u32 14, %s20
      %s239 = smul.u32 %s20, %s19
      %s240 = smul.u32 14, %s239
      %p241 = scmp.lt.s32.totalorder %s240, 13
      %s242 = scalar_select %p241, %s240, 13
      %s243 = smul.addr %s242, 6
      %s244 = smul.addr %s243, 8
      %s245 = scalar_lea.vmem %s4, %s244
      %s246 = smul.u32 %s20, %s19
      %s247 = smul.u32 14, %s246
      %v248 = vld [vmem:[%s230] sm:$0xff]
      %v249 = vld [vmem:[%s230 + $0x8] sm:$0xff]
      %v250 = vld [vmem:[%s230 + $0x20] sm:$0x3f]
      %v251 = vld [vmem:[%s230 + $0x28] sm:$0x3f]
      %v252 = vld [vmem:[%s230 + $0x80] sm:$0xff]
      %v253 = vld [vmem:[%s230 + $0x88] sm:$0xff]
      %v254 = vld [vmem:[%s230 + $0xa0] sm:$0x3f]
      %v255 = vld [vmem:[%s230 + $0xa8] sm:$0x3f]
      %v256 = vld [vmem:[%s230 + $0x100] sm:$0xff]
      %v257 = vld [vmem:[%s230 + $0x108] sm:$0xff]
      %v258 = vld [vmem:[%s230 + $0x120] sm:$0x3f]
      %v259 = vld [vmem:[%s230 + $0x128] sm:$0x3f]
      %v260 = vld [vmem:[%s230 + $0x180] sm:$0xff]
      %v261 = vld [vmem:[%s230 + $0x188] sm:$0xff]
      %v262 = vld [vmem:[%s230 + $0x1a0] sm:$0x3f]
      %v263 = vld [vmem:[%s230 + $0x1a8] sm:$0x3f]
      %v264 = vld [vmem:[%s230 + $0x200] sm:$0xff]
      %v265 = vld [vmem:[%s230 + $0x208] sm:$0xff]
      %v266 = vld [vmem:[%s230 + $0x220] sm:$0x3f]
      %v267 = vld [vmem:[%s230 + $0x228] sm:$0x3f]
      %v268 = vld [vmem:[%s230 + $0x280] sm:$0xff]
      %v269 = vld [vmem:[%s230 + $0x288] sm:$0xff]
      %v270 = vld [vmem:[%s230 + $0x2a0] sm:$0x3f]
      %v271 = vld [vmem:[%s230 + $0x2a8] sm:$0x3f]
      %v272 = vld [vmem:[%s230 + $0x300] sm:$0xff]
      %v273 = vld [vmem:[%s230 + $0x308] sm:$0xff]
      %v274 = vld [vmem:[%s230 + $0x320] sm:$0x3f]
      %v275 = vld [vmem:[%s230 + $0x328] sm:$0x3f]
      %v276 = vld [vmem:[%s230 + $0x380] sm:$0xff]
      %v277 = vld [vmem:[%s230 + $0x388] sm:$0xff]
      %v278 = vld [vmem:[%s230 + $0x3a0] sm:$0x3f]
      %v279 = vld [vmem:[%s230 + $0x3a8] sm:$0x3f]
      %v280 = vld [vmem:[%s230 + $0x400] sm:$0xff]
      %v281 = vld [vmem:[%s230 + $0x408] sm:$0xff]
      %v282 = vld [vmem:[%s230 + $0x420] sm:$0x3f]
      %v283 = vld [vmem:[%s230 + $0x428] sm:$0x3f]
      %v284 = vld [vmem:[%s230 + $0x480] sm:$0xff]
      %v285 = vld [vmem:[%s230 + $0x488] sm:$0xff]
      %v286 = vld [vmem:[%s230 + $0x4a0] sm:$0x3f]
      %v287 = vld [vmem:[%s230 + $0x4a8] sm:$0x3f]
      %v288 = vld [vmem:[%s230 + $0x500] sm:$0xff]
      %v289 = vld [vmem:[%s230 + $0x508] sm:$0xff]
      %v290 = vld [vmem:[%s230 + $0x520] sm:$0x3f]
      %v291 = vld [vmem:[%s230 + $0x528] sm:$0x3f]
      %v292 = vld [vmem:[%s230 + $0x580] sm:$0xff]
      %v293 = vld [vmem:[%s230 + $0x588] sm:$0xff]
      %v294 = vld [vmem:[%s230 + $0x5a0] sm:$0x3f]
      %v295 = vld [vmem:[%s230 + $0x5a8] sm:$0x3f]
      %v296 = vld [vmem:[%s230 + $0x600] sm:$0xff]
      %v297 = vld [vmem:[%s230 + $0x608] sm:$0xff]
      %v298 = vld [vmem:[%s230 + $0x620] sm:$0x3f]
      %v299 = vld [vmem:[%s230 + $0x628] sm:$0x3f]
      %v300 = vld [vmem:[%s230 + $0x680] sm:$0xff]
      %v301 = vld [vmem:[%s230 + $0x688] sm:$0xff]
      %v302 = vld [vmem:[%s230 + $0x6a0] sm:$0x3f]
      %v303 = vld [vmem:[%s230 + $0x6a8] sm:$0x3f]
      %v304 = vld [vmem:[%s230 + $0x10] sm:$0xff]
      %v305 = vld [vmem:[%s230 + $0x18] sm:$0xff]
      %v306 = vld [vmem:[%s230 + $0x30] sm:$0x3f]
      %v307 = vld [vmem:[%s230 + $0x38] sm:$0x3f]
      %v308 = vld [vmem:[%s230 + $0x90] sm:$0xff]
      %v309 = vld [vmem:[%s230 + $0x98] sm:$0xff]
      %v310 = vld [vmem:[%s230 + $0xb0] sm:$0x3f]
      %v311 = vld [vmem:[%s230 + $0xb8] sm:$0x3f]
      %v312 = vld [vmem:[%s230 + $0x110] sm:$0xff]
      %v313 = vld [vmem:[%s230 + $0x118] sm:$0xff]
      %v314 = vld [vmem:[%s230 + $0x130] sm:$0x3f]
      %v315 = vld [vmem:[%s230 + $0x138] sm:$0x3f]
      %v316 = vld [vmem:[%s230 + $0x190] sm:$0xff]
      %v317 = vld [vmem:[%s230 + $0x198] sm:$0xff]
      %v318 = vld [vmem:[%s230 + $0x1b0] sm:$0x3f]
      %v319 = vld [vmem:[%s230 + $0x1b8] sm:$0x3f]
      %v320 = vld [vmem:[%s230 + $0x210] sm:$0xff]
      %v321 = vld [vmem:[%s230 + $0x218] sm:$0xff]
      %v322 = vld [vmem:[%s230 + $0x230] sm:$0x3f]
      %v323 = vld [vmem:[%s230 + $0x238] sm:$0x3f]
      %v324 = vld [vmem:[%s230 + $0x290] sm:$0xff]
      %v325 = vld [vmem:[%s230 + $0x298] sm:$0xff]
      %v326 = vld [vmem:[%s230 + $0x2b0] sm:$0x3f]
      %v327 = vld [vmem:[%s230 + $0x2b8] sm:$0x3f]
      %v328 = vld [vmem:[%s230 + $0x310] sm:$0xff]
      %v329 = vld [vmem:[%s230 + $0x318] sm:$0xff]
      %v330 = vld [vmem:[%s230 + $0x330] sm:$0x3f]
      %v331 = vld [vmem:[%s230 + $0x338] sm:$0x3f]
      %v332 = vld [vmem:[%s230 + $0x390] sm:$0xff]
      %v333 = vld [vmem:[%s230 + $0x398] sm:$0xff]
      %v334 = vld [vmem:[%s230 + $0x3b0] sm:$0x3f]
      %v335 = vld [vmem:[%s230 + $0x3b8] sm:$0x3f]
      %v336 = vld [vmem:[%s230 + $0x410] sm:$0xff]
      %v337 = vld [vmem:[%s230 + $0x418] sm:$0xff]
      %v338 = vld [vmem:[%s230 + $0x430] sm:$0x3f]
      %v339 = vld [vmem:[%s230 + $0x438] sm:$0x3f]
      %v340 = vld [vmem:[%s230 + $0x490] sm:$0xff]
      %v341 = vld [vmem:[%s230 + $0x498] sm:$0xff]
      %v342 = vld [vmem:[%s230 + $0x4b0] sm:$0x3f]
      %v343 = vld [vmem:[%s230 + $0x4b8] sm:$0x3f]
      %v344 = vld [vmem:[%s230 + $0x510] sm:$0xff]
      %v345 = vld [vmem:[%s230 + $0x518] sm:$0xff]
      %v346 = vld [vmem:[%s230 + $0x530] sm:$0x3f]
      %v347 = vld [vmem:[%s230 + $0x538] sm:$0x3f]
      %v348 = vld [vmem:[%s230 + $0x590] sm:$0xff]
      %v349 = vld [vmem:[%s230 + $0x598] sm:$0xff]
      %v350 = vld [vmem:[%s230 + $0x5b0] sm:$0x3f]
      %v351 = vld [vmem:[%s230 + $0x5b8] sm:$0x3f]
      %v352 = vld [vmem:[%s230 + $0x610] sm:$0xff]
      %v353 = vld [vmem:[%s230 + $0x618] sm:$0xff]
      %v354 = vld [vmem:[%s230 + $0x630] sm:$0x3f]
      %v355 = vld [vmem:[%s230 + $0x638] sm:$0x3f]
      %v356 = vld [vmem:[%s230 + $0x690] sm:$0xff]
      %v357 = vld [vmem:[%s230 + $0x698] sm:$0xff]
      %v358 = vld [vmem:[%s230 + $0x6b0] sm:$0x3f]
      %v359 = vld [vmem:[%s230 + $0x6b8] sm:$0x3f]
      %v360 = vadd.f32 %v248, %v304
      %v361 = vadd.f32 %v249, %v305
      %v362 = vadd.f32 %v250, %v306
      %v363 = vadd.f32 %v251, %v307
      %v364 = vadd.f32 %v252, %v308
      %v365 = vadd.f32 %v253, %v309
      %v366 = vadd.f32 %v254, %v310
      %v367 = vadd.f32 %v255, %v311
      %v368 = vadd.f32 %v256, %v312
      %v369 = vadd.f32 %v257, %v313
      %v370 = vadd.f32 %v258, %v314
      %v371 = vadd.f32 %v259, %v315
      %v372 = vadd.f32 %v260, %v316
      %v373 = vadd.f32 %v261, %v317
      %v374 = vadd.f32 %v262, %v318
      %v375 = vadd.f32 %v263, %v319
      %v376 = vadd.f32 %v264, %v320
      %v377 = vadd.f32 %v265, %v321
      %v378 = vadd.f32 %v266, %v322
      %v379 = vadd.f32 %v267, %v323
      %v380 = vadd.f32 %v268, %v324
      %v381 = vadd.f32 %v269, %v325
      %v382 = vadd.f32 %v270, %v326
      %v383 = vadd.f32 %v271, %v327
      %v384 = vadd.f32 %v272, %v328
      %v385 = vadd.f32 %v273, %v329
      %v386 = vadd.f32 %v274, %v330
      %v387 = vadd.f32 %v275, %v331
      %v388 = vadd.f32 %v276, %v332
      %v389 = vadd.f32 %v277, %v333
      %v390 = vadd.f32 %v278, %v334
      %v391 = vadd.f32 %v279, %v335
      %v392 = vadd.f32 %v280, %v336
      %v393 = vadd.f32 %v281, %v337
      %v394 = vadd.f32 %v282, %v338
      %v395 = vadd.f32 %v283, %v339
      %v396 = vadd.f32 %v284, %v340
      %v397 = vadd.f32 %v285, %v341
      %v398 = vadd.f32 %v286, %v342
      %v399 = vadd.f32 %v287, %v343
      %v400 = vadd.f32 %v288, %v344
      %v401 = vadd.f32 %v289, %v345
      %v402 = vadd.f32 %v290, %v346
      %v403 = vadd.f32 %v291, %v347
      %v404 = vadd.f32 %v292, %v348
      %v405 = vadd.f32 %v293, %v349
      %v406 = vadd.f32 %v294, %v350
      %v407 = vadd.f32 %v295, %v351
      %v408 = vadd.f32 %v296, %v352
      %v409 = vadd.f32 %v297, %v353
      %v410 = vadd.f32 %v298, %v354
      %v411 = vadd.f32 %v299, %v355
      %v412 = vadd.f32 %v300, %v356
      %v413 = vadd.f32 %v301, %v357
      %v414 = vadd.f32 %v302, %v358
      %v415 = vadd.f32 %v303, %v359
      %s416 = scalar_lea.vmem %s230, 64
      %v417 = vld [vmem:[%s416] sm:$0xff]
      %v418 = vld [vmem:[%s416 + $0x8] sm:$0xff]
      %v419 = vld [vmem:[%s416 + $0x20] sm:$0x3f]
      %v420 = vld [vmem:[%s416 + $0x28] sm:$0x3f]
      %v421 = vld [vmem:[%s416 + $0x80] sm:$0xff]
      %v422 = vld [vmem:[%s416 + $0x88] sm:$0xff]
      %v423 = vld [vmem:[%s416 + $0xa0] sm:$0x3f]
      %v424 = vld [vmem:[%s416 + $0xa8] sm:$0x3f]
      %v425 = vld [vmem:[%s416 + $0x100] sm:$0xff]
      %v426 = vld [vmem:[%s416 + $0x108] sm:$0xff]
      %v427 = vld [vmem:[%s416 + $0x120] sm:$0x3f]
      %v428 = vld [vmem:[%s416 + $0x128] sm:$0x3f]
      %v429 = vld [vmem:[%s416 + $0x180] sm:$0xff]
      %v430 = vld [vmem:[%s416 + $0x188] sm:$0xff]
      %v431 = vld [vmem:[%s416 + $0x1a0] sm:$0x3f]
      %v432 = vld [vmem:[%s416 + $0x1a8] sm:$0x3f]
      %v433 = vld [vmem:[%s416 + $0x200] sm:$0xff]
      %v434 = vld [vmem:[%s416 + $0x208] sm:$0xff]
      %v435 = vld [vmem:[%s416 + $0x220] sm:$0x3f]
      %v436 = vld [vmem:[%s416 + $0x228] sm:$0x3f]
      %v437 = vld [vmem:[%s416 + $0x280] sm:$0xff]
      %v438 = vld [vmem:[%s416 + $0x288] sm:$0xff]
      %v439 = vld [vmem:[%s416 + $0x2a0] sm:$0x3f]
      %v440 = vld [vmem:[%s416 + $0x2a8] sm:$0x3f]
      %v441 = vld [vmem:[%s416 + $0x300] sm:$0xff]
      %v442 = vld [vmem:[%s416 + $0x308] sm:$0xff]
      %v443 = vld [vmem:[%s416 + $0x320] sm:$0x3f]
      %v444 = vld [vmem:[%s416 + $0x328] sm:$0x3f]
      %v445 = vld [vmem:[%s416 + $0x380] sm:$0xff]
      %v446 = vld [vmem:[%s416 + $0x388] sm:$0xff]
      %v447 = vld [vmem:[%s416 + $0x3a0] sm:$0x3f]
      %v448 = vld [vmem:[%s416 + $0x3a8] sm:$0x3f]
      %v449 = vld [vmem:[%s416 + $0x400] sm:$0xff]
      %v450 = vld [vmem:[%s416 + $0x408] sm:$0xff]
      %v451 = vld [vmem:[%s416 + $0x420] sm:$0x3f]
      %v452 = vld [vmem:[%s416 + $0x428] sm:$0x3f]
      %v453 = vld [vmem:[%s416 + $0x480] sm:$0xff]
      %v454 = vld [vmem:[%s416 + $0x488] sm:$0xff]
      %v455 = vld [vmem:[%s416 + $0x4a0] sm:$0x3f]
      %v456 = vld [vmem:[%s416 + $0x4a8] sm:$0x3f]
      %v457 = vld [vmem:[%s416 + $0x500] sm:$0xff]
      %v458 = vld [vmem:[%s416 + $0x508] sm:$0xff]
      %v459 = vld [vmem:[%s416 + $0x520] sm:$0x3f]
      %v460 = vld [vmem:[%s416 + $0x528] sm:$0x3f]
      %v461 = vld [vmem:[%s416 + $0x580] sm:$0xff]
      %v462 = vld [vmem:[%s416 + $0x588] sm:$0xff]
      %v463 = vld [vmem:[%s416 + $0x5a0] sm:$0x3f]
      %v464 = vld [vmem:[%s416 + $0x5a8] sm:$0x3f]
      %v465 = vld [vmem:[%s416 + $0x600] sm:$0xff]
      %v466 = vld [vmem:[%s416 + $0x608] sm:$0xff]
      %v467 = vld [vmem:[%s416 + $0x620] sm:$0x3f]
      %v468 = vld [vmem:[%s416 + $0x628] sm:$0x3f]
      %v469 = vld [vmem:[%s416 + $0x680] sm:$0xff]
      %v470 = vld [vmem:[%s416 + $0x688] sm:$0xff]
      %v471 = vld [vmem:[%s416 + $0x6a0] sm:$0x3f]
      %v472 = vld [vmem:[%s416 + $0x6a8] sm:$0x3f]
      %v473 = vadd.f32 %v360, %v417
      %v474 = vadd.f32 %v361, %v418
      %v475 = vadd.f32 %v362, %v419
      %v476 = vadd.f32 %v363, %v420
      %v477 = vadd.f32 %v364, %v421
      %v478 = vadd.f32 %v365, %v422
      %v479 = vadd.f32 %v366, %v423
      %v480 = vadd.f32 %v367, %v424
      %v481 = vadd.f32 %v368, %v425
      %v482 = vadd.f32 %v369, %v426
      %v483 = vadd.f32 %v370, %v427
      %v484 = vadd.f32 %v371, %v428
      %v485 = vadd.f32 %v372, %v429
      %v486 = vadd.f32 %v373, %v430
      %v487 = vadd.f32 %v374, %v431
      %v488 = vadd.f32 %v375, %v432
      %v489 = vadd.f32 %v376, %v433
      %v490 = vadd.f32 %v377, %v434
      %v491 = vadd.f32 %v378, %v435
      %v492 = vadd.f32 %v379, %v436
      %v493 = vadd.f32 %v380, %v437
      %v494 = vadd.f32 %v381, %v438
      %v495 = vadd.f32 %v382, %v439
      %v496 = vadd.f32 %v383, %v440
      %v497 = vadd.f32 %v384, %v441
      %v498 = vadd.f32 %v385, %v442
      %v499 = vadd.f32 %v386, %v443
      %v500 = vadd.f32 %v387, %v444
      %v501 = vadd.f32 %v388, %v445
      %v502 = vadd.f32 %v389, %v446
      %v503 = vadd.f32 %v390, %v447
      %v504 = vadd.f32 %v391, %v448
      %v505 = vadd.f32 %v392, %v449
      %v506 = vadd.f32 %v393, %v450
      %v507 = vadd.f32 %v394, %v451
      %v508 = vadd.f32 %v395, %v452
      %v509 = vadd.f32 %v396, %v453
      %v510 = vadd.f32 %v397, %v454
      %v511 = vadd.f32 %v398, %v455
      %v512 = vadd.f32 %v399, %v456
      %v513 = vadd.f32 %v400, %v457
      %v514 = vadd.f32 %v401, %v458
      %v515 = vadd.f32 %v402, %v459
      %v516 = vadd.f32 %v403, %v460
      %v517 = vadd.f32 %v404, %v461
      %v518 = vadd.f32 %v405, %v462
      %v519 = vadd.f32 %v406, %v463
      %v520 = vadd.f32 %v407, %v464
      %v521 = vadd.f32 %v408, %v465
      %v522 = vadd.f32 %v409, %v466
      %v523 = vadd.f32 %v410, %v467
      %v524 = vadd.f32 %v411, %v468
      %v525 = vadd.f32 %v412, %v469
      %v526 = vadd.f32 %v413, %v470
      %v527 = vadd.f32 %v414, %v471
      %v528 = vadd.f32 %v415, %v472
      %v529 = vld [vmem:[%s416 + $0x10] sm:$0xff]
      %v530 = vld [vmem:[%s416 + $0x18] sm:$0xff]
      %v531 = vld [vmem:[%s416 + $0x30] sm:$0x3f]
      %v532 = vld [vmem:[%s416 + $0x38] sm:$0x3f]
      %v533 = vld [vmem:[%s416 + $0x90] sm:$0xff]
      %v534 = vld [vmem:[%s416 + $0x98] sm:$0xff]
      %v535 = vld [vmem:[%s416 + $0xb0] sm:$0x3f]
      %v536 = vld [vmem:[%s416 + $0xb8] sm:$0x3f]
      %v537 = vld [vmem:[%s416 + $0x110] sm:$0xff]
      %v538 = vld [vmem:[%s416 + $0x118] sm:$0xff]
      %v539 = vld [vmem:[%s416 + $0x130] sm:$0x3f]
      %v540 = vld [vmem:[%s416 + $0x138] sm:$0x3f]
      %v541 = vld [vmem:[%s416 + $0x190] sm:$0xff]
      %v542 = vld [vmem:[%s416 + $0x198] sm:$0xff]
      %v543 = vld [vmem:[%s416 + $0x1b0] sm:$0x3f]
      %v544 = vld [vmem:[%s416 + $0x1b8] sm:$0x3f]
      %v545 = vld [vmem:[%s416 + $0x210] sm:$0xff]
      %v546 = vld [vmem:[%s416 + $0x218] sm:$0xff]
      %v547 = vld [vmem:[%s416 + $0x230] sm:$0x3f]
      %v548 = vld [vmem:[%s416 + $0x238] sm:$0x3f]
      %v549 = vld [vmem:[%s416 + $0x290] sm:$0xff]
      %v550 = vld [vmem:[%s416 + $0x298] sm:$0xff]
      %v551 = vld [vmem:[%s416 + $0x2b0] sm:$0x3f]
      %v552 = vld [vmem:[%s416 + $0x2b8] sm:$0x3f]
      %v553 = vld [vmem:[%s416 + $0x310] sm:$0xff]
      %v554 = vld [vmem:[%s416 + $0x318] sm:$0xff]
      %v555 = vld [vmem:[%s416 + $0x330] sm:$0x3f]
      %v556 = vld [vmem:[%s416 + $0x338] sm:$0x3f]
      %v557 = vld [vmem:[%s416 + $0x390] sm:$0xff]
      %v558 = vld [vmem:[%s416 + $0x398] sm:$0xff]
      %v559 = vld [vmem:[%s416 + $0x3b0] sm:$0x3f]
      %v560 = vld [vmem:[%s416 + $0x3b8] sm:$0x3f]
      %v561 = vld [vmem:[%s416 + $0x410] sm:$0xff]
      %v562 = vld [vmem:[%s416 + $0x418] sm:$0xff]
      %v563 = vld [vmem:[%s416 + $0x430] sm:$0x3f]
      %v564 = vld [vmem:[%s416 + $0x438] sm:$0x3f]
      %v565 = vld [vmem:[%s416 + $0x490] sm:$0xff]
      %v566 = vld [vmem:[%s416 + $0x498] sm:$0xff]
      %v567 = vld [vmem:[%s416 + $0x4b0] sm:$0x3f]
      %v568 = vld [vmem:[%s416 + $0x4b8] sm:$0x3f]
      %v569 = vld [vmem:[%s416 + $0x510] sm:$0xff]
      %v570 = vld [vmem:[%s416 + $0x518] sm:$0xff]
      %v571 = vld [vmem:[%s416 + $0x530] sm:$0x3f]
      %v572 = vld [vmem:[%s416 + $0x538] sm:$0x3f]
      %v573 = vld [vmem:[%s416 + $0x590] sm:$0xff]
      %v574 = vld [vmem:[%s416 + $0x598] sm:$0xff]
      %v575 = vld [vmem:[%s416 + $0x5b0] sm:$0x3f]
      %v576 = vld [vmem:[%s416 + $0x5b8] sm:$0x3f]
      %v577 = vld [vmem:[%s416 + $0x610] sm:$0xff]
      %v578 = vld [vmem:[%s416 + $0x618] sm:$0xff]
      %v579 = vld [vmem:[%s416 + $0x630] sm:$0x3f]
      %v580 = vld [vmem:[%s416 + $0x638] sm:$0x3f]
      %v581 = vld [vmem:[%s416 + $0x690] sm:$0xff]
      %v582 = vld [vmem:[%s416 + $0x698] sm:$0xff]
      %v583 = vld [vmem:[%s416 + $0x6b0] sm:$0x3f]
      %v584 = vld [vmem:[%s416 + $0x6b8] sm:$0x3f]
      %v585 = vadd.f32 %v473, %v529
      %v586 = vadd.f32 %v474, %v530
      %v587 = vadd.f32 %v475, %v531
      %v588 = vadd.f32 %v476, %v532
      %v589 = vadd.f32 %v477, %v533
      %v590 = vadd.f32 %v478, %v534
      %v591 = vadd.f32 %v479, %v535
      %v592 = vadd.f32 %v480, %v536
      %v593 = vadd.f32 %v481, %v537
      %v594 = vadd.f32 %v482, %v538
      %v595 = vadd.f32 %v483, %v539
      %v596 = vadd.f32 %v484, %v540
      %v597 = vadd.f32 %v485, %v541
      %v598 = vadd.f32 %v486, %v542
      %v599 = vadd.f32 %v487, %v543
      %v600 = vadd.f32 %v488, %v544
      %v601 = vadd.f32 %v489, %v545
      %v602 = vadd.f32 %v490, %v546
      %v603 = vadd.f32 %v491, %v547
      %v604 = vadd.f32 %v492, %v548
      %v605 = vadd.f32 %v493, %v549
      %v606 = vadd.f32 %v494, %v550
      %v607 = vadd.f32 %v495, %v551
      %v608 = vadd.f32 %v496, %v552
      %v609 = vadd.f32 %v497, %v553
      %v610 = vadd.f32 %v498, %v554
      %v611 = vadd.f32 %v499, %v555
      %v612 = vadd.f32 %v500, %v556
      %v613 = vadd.f32 %v501, %v557
      %v614 = vadd.f32 %v502, %v558
      %v615 = vadd.f32 %v503, %v559
      %v616 = vadd.f32 %v504, %v560
      %v617 = vadd.f32 %v505, %v561
      %v618 = vadd.f32 %v506, %v562
      %v619 = vadd.f32 %v507, %v563
      %v620 = vadd.f32 %v508, %v564
      %v621 = vadd.f32 %v509, %v565
      %v622 = vadd.f32 %v510, %v566
      %v623 = vadd.f32 %v511, %v567
      %v624 = vadd.f32 %v512, %v568
      %v625 = vadd.f32 %v513, %v569
      %v626 = vadd.f32 %v514, %v570
      %v627 = vadd.f32 %v515, %v571
      %v628 = vadd.f32 %v516, %v572
      %v629 = vadd.f32 %v517, %v573
      %v630 = vadd.f32 %v518, %v574
      %v631 = vadd.f32 %v519, %v575
      %v632 = vadd.f32 %v520, %v576
      %v633 = vadd.f32 %v521, %v577
      %v634 = vadd.f32 %v522, %v578
      %v635 = vadd.f32 %v523, %v579
      %v636 = vadd.f32 %v524, %v580
      %v637 = vadd.f32 %v525, %v581
      %v638 = vadd.f32 %v526, %v582
      %v639 = vadd.f32 %v527, %v583
      %v640 = vadd.f32 %v528, %v584
      %v641 = vld [vmem:[%s237] sm:$0xff]
      %v642 = vld [vmem:[%s237 + $0x8] sm:$0x3f]
      %v643 = vld [vmem:[%s237 + $0x10] sm:$0xff]
      %v644 = vld [vmem:[%s237 + $0x18] sm:$0x3f]
      %v645 = vld [vmem:[%s237 + $0x20] sm:$0xff]
      %v646 = vld [vmem:[%s237 + $0x28] sm:$0x3f]
      %v647 = vld [vmem:[%s237 + $0x30] sm:$0xff]
      %v648 = vld [vmem:[%s237 + $0x38] sm:$0x3f]
      %v649 = vld [vmem:[%s237 + $0x40] sm:$0xff]
      %v650 = vld [vmem:[%s237 + $0x48] sm:$0x3f]
      %v651 = vld [vmem:[%s237 + $0x50] sm:$0xff]
      %v652 = vld [vmem:[%s237 + $0x58] sm:$0x3f]
      %v653 = vld [vmem:[%s237 + $0x60] sm:$0xff]
      %v654 = vld [vmem:[%s237 + $0x68] sm:$0x3f]
      %v655 = vld [vmem:[%s237 + $0x70] sm:$0xff]
      %v656 = vld [vmem:[%s237 + $0x78] sm:$0x3f]
      %v657 = vld [vmem:[%s237 + $0x80] sm:$0xff]
      %v658 = vld [vmem:[%s237 + $0x88] sm:$0x3f]
      %v659 = vld [vmem:[%s237 + $0x90] sm:$0xff]
      %v660 = vld [vmem:[%s237 + $0x98] sm:$0x3f]
      %v661 = vld [vmem:[%s237 + $0xa0] sm:$0xff]
      %v662 = vld [vmem:[%s237 + $0xa8] sm:$0x3f]
      %v663 = vld [vmem:[%s237 + $0xb0] sm:$0xff]
      %v664 = vld [vmem:[%s237 + $0xb8] sm:$0x3f]
      %v665 = vld [vmem:[%s237 + $0xc0] sm:$0xff]
      %v666 = vld [vmem:[%s237 + $0xc8] sm:$0x3f]
      %v667 = vld [vmem:[%s237 + $0xd0] sm:$0xff]
      %v668 = vld [vmem:[%s237 + $0xd8] sm:$0x3f]
      %p669 = scmp.eq.s32.totalorder %s19, 0
      %p670 = scmp.eq.s32.totalorder %s20, 0
      %p671 = pnand %p669, %p670
      %p672 = pneg %p671
      // Predicated region
      $region37: #{forward.1} parent=35 // pred_check
        _
      $region38: #{forward.1} parent=35 // pred_check_branch
        %674 = sbr.rel (%p671) target = $region40
      $region39: #{forward.1} parent=35 // pred_region
        %vm675 = vcmask 1041408
        %vm676 = vcmask 1043458
        %vm677 = vmor %vm676, %vm675
        %vm678 = vcmask 259076
        %vm679 = vmor %vm678, %vm677
        %680 = vst.msk [vmem:[#allocation2] sm:$0x3f] %vm679, 0.0
      $region40: #{forward.1} parent=35 // pred_fallthru
        _
      // Predicated region
      $region41: #{forward.1} parent=35 // pred_check
        %p681 = pneg %p669
      $region42: #{forward.1} parent=35 // pred_check_branch
        %683 = sbr.rel (%p681) target = $region44
      $region43: #{forward.1} parent=35 // pred_region
        %v684 = vadd.f32 %v585, %v589
        %v685 = vadd.f32 %v684, %v593
        %v686 = vadd.f32 %v685, %v597
        %v687 = vadd.f32 %v686, %v601
        %v688 = vadd.f32 %v687, %v605
        %v689 = vadd.f32 %v688, %v609
        %v690 = vadd.f32 %v689, %v613
        %v691 = vadd.f32 %v690, %v617
        %v692 = vadd.f32 %v691, %v621
        %v693 = vadd.f32 %v692, %v625
        %v694 = vadd.f32 %v693, %v629
        %v695 = vadd.f32 %v694, %v633
        %v696 = vadd.f32 %v695, %v637
        %v697 = vadd.f32 %v586, %v590
        %v698 = vadd.f32 %v697, %v594
        %v699 = vadd.f32 %v698, %v598
        %v700 = vadd.f32 %v699, %v602
        %v701 = vadd.f32 %v700, %v606
        %v702 = vadd.f32 %v701, %v610
        %v703 = vadd.f32 %v702, %v614
        %v704 = vadd.f32 %v703, %v618
        %v705 = vadd.f32 %v704, %v622
        %v706 = vadd.f32 %v705, %v626
        %v707 = vadd.f32 %v706, %v630
        %v708 = vadd.f32 %v707, %v634
        %v709 = vadd.f32 %v708, %v638
        %vm710 = vcmask 1045504
        %v711 = vsel %vm710, %v587, 0.0
        %v712 = vsel %vm710, %v591, 0.0
        %v713 = vadd.f32 %v711, %v712
        %v714 = vsel %vm710, %v595, 0.0
        %v715 = vadd.f32 %v713, %v714
        %v716 = vsel %vm710, %v599, 0.0
        %v717 = vadd.f32 %v715, %v716
        %v718 = vsel %vm710, %v603, 0.0
        %v719 = vadd.f32 %v717, %v718
        %v720 = vsel %vm710, %v607, 0.0
        %v721 = vadd.f32 %v719, %v720
        %v722 = vsel %vm710, %v611, 0.0
        %v723 = vadd.f32 %v721, %v722
        %v724 = vsel %vm710, %v615, 0.0
        %v725 = vadd.f32 %v723, %v724
        %v726 = vsel %vm710, %v619, 0.0
        %v727 = vadd.f32 %v725, %v726
        %v728 = vsel %vm710, %v623, 0.0
        %v729 = vadd.f32 %v727, %v728
        %v730 = vsel %vm710, %v627, 0.0
        %v731 = vadd.f32 %v729, %v730
        %v732 = vsel %vm710, %v631, 0.0
        %v733 = vadd.f32 %v731, %v732
        %v734 = vsel %vm710, %v635, 0.0
        %v735 = vadd.f32 %v733, %v734
        %v736 = vsel %vm710, %v639, 0.0
        %v737 = vadd.f32 %v735, %v736
        %v738 = vsel %vm710, %v588, 0.0
        %v739 = vsel %vm710, %v592, 0.0
        %v740 = vadd.f32 %v738, %v739
        %v741 = vsel %vm710, %v596, 0.0
        %v742 = vadd.f32 %v740, %v741
        %v743 = vsel %vm710, %v600, 0.0
        %v744 = vadd.f32 %v742, %v743
        %v745 = vsel %vm710, %v604, 0.0
        %v746 = vadd.f32 %v744, %v745
        %v747 = vsel %vm710, %v608, 0.0
        %v748 = vadd.f32 %v746, %v747
        %v749 = vsel %vm710, %v612, 0.0
        %v750 = vadd.f32 %v748, %v749
        %v751 = vsel %vm710, %v616, 0.0
        %v752 = vadd.f32 %v750, %v751
        %v753 = vsel %vm710, %v620, 0.0
        %v754 = vadd.f32 %v752, %v753
        %v755 = vsel %vm710, %v624, 0.0
        %v756 = vadd.f32 %v754, %v755
        %v757 = vsel %vm710, %v628, 0.0
        %v758 = vadd.f32 %v756, %v757
        %v759 = vsel %vm710, %v632, 0.0
        %v760 = vadd.f32 %v758, %v759
        %v761 = vsel %vm710, %v636, 0.0
        %v762 = vadd.f32 %v760, %v761
        %v763 = vsel %vm710, %v640, 0.0
        %v764 = vadd.f32 %v762, %v763
        %v765 = vsel %vm710, %v737, 0.0
        %v766 = vadd.f32 %v696, %v765
        %v767 = vrot.slane %v766, 4
        %v768 = vadd.f32 %v766, %v767
        %v769 = vrot.slane %v768, 2
        %v770 = vadd.f32 %v768, %v769
        %v771 = vrot.slane %v770, 1
        %v772 = vadd.f32 %v770, %v771
        %v773 = vsel %vm710, %v764, 0.0
        %v774 = vadd.f32 %v709, %v773
        %v775 = vrot.slane %v774, 4
        %v776 = vadd.f32 %v774, %v775
        %v777 = vrot.slane %v776, 2
        %v778 = vadd.f32 %v776, %v777
        %v779 = vrot.slane %v778, 1
        %v780 = vadd.f32 %v778, %v779
        %v781 = vmul.f32 %v585, %v585
        %v782 = vmul.f32 %v586, %v586
        %v783 = vmul.f32 %v587, %v587
        %v784 = vmul.f32 %v588, %v588
        %v785 = vmul.f32 %v589, %v589
        %v786 = vmul.f32 %v590, %v590
        %v787 = vmul.f32 %v591, %v591
        %v788 = vmul.f32 %v592, %v592
        %v789 = vmul.f32 %v593, %v593
        %v790 = vmul.f32 %v594, %v594
        %v791 = vmul.f32 %v595, %v595
        %v792 = vmul.f32 %v596, %v596
        %v793 = vmul.f32 %v597, %v597
        %v794 = vmul.f32 %v598, %v598
        %v795 = vmul.f32 %v599, %v599
        %v796 = vmul.f32 %v600, %v600
        %v797 = vmul.f32 %v601, %v601
        %v798 = vmul.f32 %v602, %v602
        %v799 = vmul.f32 %v603, %v603
        %v800 = vmul.f32 %v604, %v604
        %v801 = vmul.f32 %v605, %v605
        %v802 = vmul.f32 %v606, %v606
        %v803 = vmul.f32 %v607, %v607
        %v804 = vmul.f32 %v608, %v608
        %v805 = vmul.f32 %v609, %v609
        %v806 = vmul.f32 %v610, %v610
        %v807 = vmul.f32 %v611, %v611
        %v808 = vmul.f32 %v612, %v612
        %v809 = vmul.f32 %v613, %v613
        %v810 = vmul.f32 %v614, %v614
        %v811 = vmul.f32 %v615, %v615
        %v812 = vmul.f32 %v616, %v616
        %v813 = vmul.f32 %v617, %v617
        %v814 = vmul.f32 %v618, %v618
        %v815 = vmul.f32 %v619, %v619
        %v816 = vmul.f32 %v620, %v620
        %v817 = vmul.f32 %v621, %v621
        %v818 = vmul.f32 %v622, %v622
        %v819 = vmul.f32 %v623, %v623
        %v820 = vmul.f32 %v624, %v624
        %v821 = vmul.f32 %v625, %v625
        %v822 = vmul.f32 %v626, %v626
        %v823 = vmul.f32 %v627, %v627
        %v824 = vmul.f32 %v628, %v628
        %v825 = vmul.f32 %v629, %v629
        %v826 = vmul.f32 %v630, %v630
        %v827 = vmul.f32 %v631, %v631
        %v828 = vmul.f32 %v632, %v632
        %v829 = vmul.f32 %v633, %v633
        %v830 = vmul.f32 %v634, %v634
        %v831 = vmul.f32 %v635, %v635
        %v832 = vmul.f32 %v636, %v636
        %v833 = vmul.f32 %v637, %v637
        %v834 = vmul.f32 %v638, %v638
        %v835 = vmul.f32 %v639, %v639
        %v836 = vmul.f32 %v640, %v640
        %v837 = vadd.f32 %v781, %v785
        %v838 = vadd.f32 %v837, %v789
        %v839 = vadd.f32 %v838, %v793
        %v840 = vadd.f32 %v839, %v797
        %v841 = vadd.f32 %v840, %v801
        %v842 = vadd.f32 %v841, %v805
        %v843 = vadd.f32 %v842, %v809
        %v844 = vadd.f32 %v843, %v813
        %v845 = vadd.f32 %v844, %v817
        %v846 = vadd.f32 %v845, %v821
        %v847 = vadd.f32 %v846, %v825
        %v848 = vadd.f32 %v847, %v829
        %v849 = vadd.f32 %v848, %v833
        %v850 = vadd.f32 %v782, %v786
        %v851 = vadd.f32 %v850, %v790
        %v852 = vadd.f32 %v851, %v794
        %v853 = vadd.f32 %v852, %v798
        %v854 = vadd.f32 %v853, %v802
        %v855 = vadd.f32 %v854, %v806
        %v856 = vadd.f32 %v855, %v810
        %v857 = vadd.f32 %v856, %v814
        %v858 = vadd.f32 %v857, %v818
        %v859 = vadd.f32 %v858, %v822
        %v860 = vadd.f32 %v859, %v826
        %v861 = vadd.f32 %v860, %v830
        %v862 = vadd.f32 %v861, %v834
        %v863 = vsel %vm710, %v783, 0.0
        %v864 = vsel %vm710, %v787, 0.0
        %v865 = vadd.f32 %v863, %v864
        %v866 = vsel %vm710, %v791, 0.0
        %v867 = vadd.f32 %v865, %v866
        %v868 = vsel %vm710, %v795, 0.0
        %v869 = vadd.f32 %v867, %v868
        %v870 = vsel %vm710, %v799, 0.0
        %v871 = vadd.f32 %v869, %v870
        %v872 = vsel %vm710, %v803, 0.0
        %v873 = vadd.f32 %v871, %v872
        %v874 = vsel %vm710, %v807, 0.0
        %v875 = vadd.f32 %v873, %v874
        %v876 = vsel %vm710, %v811, 0.0
        %v877 = vadd.f32 %v875, %v876
        %v878 = vsel %vm710, %v815, 0.0
        %v879 = vadd.f32 %v877, %v878
        %v880 = vsel %vm710, %v819, 0.0
        %v881 = vadd.f32 %v879, %v880
        %v882 = vsel %vm710, %v823, 0.0
        %v883 = vadd.f32 %v881, %v882
        %v884 = vsel %vm710, %v827, 0.0
        %v885 = vadd.f32 %v883, %v884
        %v886 = vsel %vm710, %v831, 0.0
        %v887 = vadd.f32 %v885, %v886
        %v888 = vsel %vm710, %v835, 0.0
        %v889 = vadd.f32 %v887, %v888
        %v890 = vsel %vm710, %v784, 0.0
        %v891 = vsel %vm710, %v788, 0.0
        %v892 = vadd.f32 %v890, %v891
        %v893 = vsel %vm710, %v792, 0.0
        %v894 = vadd.f32 %v892, %v893
        %v895 = vsel %vm710, %v796, 0.0
        %v896 = vadd.f32 %v894, %v895
        %v897 = vsel %vm710, %v800, 0.0
        %v898 = vadd.f32 %v896, %v897
        %v899 = vsel %vm710, %v804, 0.0
        %v900 = vadd.f32 %v898, %v899
        %v901 = vsel %vm710, %v808, 0.0
        %v902 = vadd.f32 %v900, %v901
        %v903 = vsel %vm710, %v812, 0.0
        %v904 = vadd.f32 %v902, %v903
        %v905 = vsel %vm710, %v816, 0.0
        %v906 = vadd.f32 %v904, %v905
        %v907 = vsel %vm710, %v820, 0.0
        %v908 = vadd.f32 %v906, %v907
        %v909 = vsel %vm710, %v824, 0.0
        %v910 = vadd.f32 %v908, %v909
        %v911 = vsel %vm710, %v828, 0.0
        %v912 = vadd.f32 %v910, %v911
        %v913 = vsel %vm710, %v832, 0.0
        %v914 = vadd.f32 %v912, %v913
        %v915 = vsel %vm710, %v836, 0.0
        %v916 = vadd.f32 %v914, %v915
        %v917 = vsel %vm710, %v889, 0.0
        %v918 = vadd.f32 %v849, %v917
        %v919 = vrot.slane %v918, 4
        %v920 = vadd.f32 %v918, %v919
        %v921 = vrot.slane %v920, 2
        %v922 = vadd.f32 %v920, %v921
        %v923 = vrot.slane %v922, 1
        %v924 = vadd.f32 %v922, %v923
        %v925 = vsel %vm710, %v916, 0.0
        %v926 = vadd.f32 %v862, %v925
        %v927 = vrot.slane %v926, 4
        %v928 = vadd.f32 %v926, %v927
        %v929 = vrot.slane %v928, 2
        %v930 = vadd.f32 %v928, %v929
        %v931 = vrot.slane %v930, 1
        %v932 = vadd.f32 %v930, %v931
        %vm933 = vcmask 261120
        %v934 = vsel %vm933, %v641, 0.0
        %v935 = vsel %vm933, %v643, 0.0
        %v936 = vadd.f32 %v934, %v935
        %v937 = vsel %vm933, %v645, 0.0
        %v938 = vadd.f32 %v936, %v937
        %v939 = vsel %vm933, %v647, 0.0
        %v940 = vadd.f32 %v938, %v939
        %v941 = vsel %vm933, %v649, 0.0
        %v942 = vadd.f32 %v940, %v941
        %v943 = vsel %vm933, %v651, 0.0
        %v944 = vadd.f32 %v942, %v943
        %v945 = vsel %vm933, %v653, 0.0
        %v946 = vadd.f32 %v944, %v945
        %v947 = vsel %vm933, %v655, 0.0
        %v948 = vadd.f32 %v946, %v947
        %v949 = vsel %vm933, %v657, 0.0
        %v950 = vadd.f32 %v948, %v949
        %v951 = vsel %vm933, %v659, 0.0
        %v952 = vadd.f32 %v950, %v951
        %v953 = vsel %vm933, %v661, 0.0
        %v954 = vadd.f32 %v952, %v953
        %v955 = vsel %vm933, %v663, 0.0
        %v956 = vadd.f32 %v954, %v955
        %v957 = vsel %vm933, %v665, 0.0
        %v958 = vadd.f32 %v956, %v957
        %v959 = vsel %vm933, %v667, 0.0
        %v960 = vadd.f32 %v958, %v959
        %vm961 = vcmask 259072
        %v962 = vsel %vm961, %v642, 0.0
        %v963 = vsel %vm961, %v644, 0.0
        %v964 = vadd.f32 %v962, %v963
        %v965 = vsel %vm961, %v646, 0.0
        %v966 = vadd.f32 %v964, %v965
        %v967 = vsel %vm961, %v648, 0.0
        %v968 = vadd.f32 %v966, %v967
        %v969 = vsel %vm961, %v650, 0.0
        %v970 = vadd.f32 %v968, %v969
        %v971 = vsel %vm961, %v652, 0.0
        %v972 = vadd.f32 %v970, %v971
        %v973 = vsel %vm961, %v654, 0.0
        %v974 = vadd.f32 %v972, %v973
        %v975 = vsel %vm961, %v656, 0.0
        %v976 = vadd.f32 %v974, %v975
        %v977 = vsel %vm961, %v658, 0.0
        %v978 = vadd.f32 %v976, %v977
        %v979 = vsel %vm961, %v660, 0.0
        %v980 = vadd.f32 %v978, %v979
        %v981 = vsel %vm961, %v662, 0.0
        %v982 = vadd.f32 %v980, %v981
        %v983 = vsel %vm961, %v664, 0.0
        %v984 = vadd.f32 %v982, %v983
        %v985 = vsel %vm961, %v666, 0.0
        %v986 = vadd.f32 %v984, %v985
        %v987 = vsel %vm961, %v668, 0.0
        %v988 = vadd.f32 %v986, %v987
        %v989 = vsel %vm933, %v960, 0.0
        %v990 = vsel %vm961, %v988, 0.0
        %v991 = vadd.f32 %v989, %v990
        %v992 = vrot.slane %v991, 4
        %v993 = vadd.f32 %v991, %v992
        %v994 = vrot.slane %v993, 2
        %v995 = vadd.f32 %v993, %v994
        %v996 = vrot.slane %v995, 1
        %v997 = vadd.f32 %v995, %v996
        %v998 = vmul.f32 %v641, %v641
        %v999 = vmul.f32 %v642, %v642
        %v1000 = vmul.f32 %v643, %v643
        %v1001 = vmul.f32 %v644, %v644
        %v1002 = vmul.f32 %v645, %v645
        %v1003 = vmul.f32 %v646, %v646
        %v1004 = vmul.f32 %v647, %v647
        %v1005 = vmul.f32 %v648, %v648
        %v1006 = vmul.f32 %v649, %v649
        %v1007 = vmul.f32 %v650, %v650
        %v1008 = vmul.f32 %v651, %v651
        %v1009 = vmul.f32 %v652, %v652
        %v1010 = vmul.f32 %v653, %v653
        %v1011 = vmul.f32 %v654, %v654
        %v1012 = vmul.f32 %v655, %v655
        %v1013 = vmul.f32 %v656, %v656
        %v1014 = vmul.f32 %v657, %v657
        %v1015 = vmul.f32 %v658, %v658
        %v1016 = vmul.f32 %v659, %v659
        %v1017 = vmul.f32 %v660, %v660
        %v1018 = vmul.f32 %v661, %v661
        %v1019 = vmul.f32 %v662, %v662
        %v1020 = vmul.f32 %v663, %v663
        %v1021 = vmul.f32 %v664, %v664
        %v1022 = vmul.f32 %v665, %v665
        %v1023 = vmul.f32 %v666, %v666
        %v1024 = vmul.f32 %v667, %v667
        %v1025 = vmul.f32 %v668, %v668
        %v1026 = vsel %vm933, %v998, 0.0
        %v1027 = vsel %vm933, %v1000, 0.0
        %v1028 = vadd.f32 %v1026, %v1027
        %v1029 = vsel %vm933, %v1002, 0.0
        %v1030 = vadd.f32 %v1028, %v1029
        %v1031 = vsel %vm933, %v1004, 0.0
        %v1032 = vadd.f32 %v1030, %v1031
        %v1033 = vsel %vm933, %v1006, 0.0
        %v1034 = vadd.f32 %v1032, %v1033
        %v1035 = vsel %vm933, %v1008, 0.0
        %v1036 = vadd.f32 %v1034, %v1035
        %v1037 = vsel %vm933, %v1010, 0.0
        %v1038 = vadd.f32 %v1036, %v1037
        %v1039 = vsel %vm933, %v1012, 0.0
        %v1040 = vadd.f32 %v1038, %v1039
        %v1041 = vsel %vm933, %v1014, 0.0
        %v1042 = vadd.f32 %v1040, %v1041
        %v1043 = vsel %vm933, %v1016, 0.0
        %v1044 = vadd.f32 %v1042, %v1043
        %v1045 = vsel %vm933, %v1018, 0.0
        %v1046 = vadd.f32 %v1044, %v1045
        %v1047 = vsel %vm933, %v1020, 0.0
        %v1048 = vadd.f32 %v1046, %v1047
        %v1049 = vsel %vm933, %v1022, 0.0
        %v1050 = vadd.f32 %v1048, %v1049
        %v1051 = vsel %vm933, %v1024, 0.0
        %v1052 = vadd.f32 %v1050, %v1051
        %v1053 = vsel %vm961, %v999, 0.0
        %v1054 = vsel %vm961, %v1001, 0.0
        %v1055 = vadd.f32 %v1053, %v1054
        %v1056 = vsel %vm961, %v1003, 0.0
        %v1057 = vadd.f32 %v1055, %v1056
        %v1058 = vsel %vm961, %v1005, 0.0
        %v1059 = vadd.f32 %v1057, %v1058
        %v1060 = vsel %vm961, %v1007, 0.0
        %v1061 = vadd.f32 %v1059, %v1060
        %v1062 = vsel %vm961, %v1009, 0.0
        %v1063 = vadd.f32 %v1061, %v1062
        %v1064 = vsel %vm961, %v1011, 0.0
        %v1065 = vadd.f32 %v1063, %v1064
        %v1066 = vsel %vm961, %v1013, 0.0
        %v1067 = vadd.f32 %v1065, %v1066
        %v1068 = vsel %vm961, %v1015, 0.0
        %v1069 = vadd.f32 %v1067, %v1068
        %v1070 = vsel %vm961, %v1017, 0.0
        %v1071 = vadd.f32 %v1069, %v1070
        %v1072 = vsel %vm961, %v1019, 0.0
        %v1073 = vadd.f32 %v1071, %v1072
        %v1074 = vsel %vm961, %v1021, 0.0
        %v1075 = vadd.f32 %v1073, %v1074
        %v1076 = vsel %vm961, %v1023, 0.0
        %v1077 = vadd.f32 %v1075, %v1076
        %v1078 = vsel %vm961, %v1025, 0.0
        %v1079 = vadd.f32 %v1077, %v1078
        %v1080 = vsel %vm933, %v1052, 0.0
        %v1081 = vsel %vm961, %v1079, 0.0
        %v1082 = vadd.f32 %v1080, %v1081
        %v1083 = vrot.slane %v1082, 4
        %v1084 = vadd.f32 %v1082, %v1083
        %v1085 = vrot.slane %v1084, 2
        %v1086 = vadd.f32 %v1084, %v1085
        %v1087 = vrot.slane %v1086, 1
        %v1088 = vadd.f32 %v1086, %v1087
        %v1089 = vld [vmem:[#allocation2] ss:$2 sm:$0x3]
        %v1092 = vrot.slane %v780, 7
        %vm1093 = vcmask 1040384
        %v1094 = vsel %vm1093, %v772, %v1092
        %v1096 = vadd.f32 %v1089, %v1094
        %v1097 = vlaneseq
        %vm1098 = vcmp.ge.s32.totalorder %v1097, 0
        %vm1099 = vcmp.lt.s32.totalorder %v1097, 256
        %vm1100 = vmand %vm1098, %vm1099
        %1101 = vst.msk [vmem:[#allocation2] ss:$2 sm:$0x3] %vm1100, %v1096
        %s1102 = scalar_lea.vmem [#allocation2], 1
        %v1103 = vld [vmem:[%s1102] ss:$2 sm:$0x3]
        %v1106 = vrot.slane %v932, 7
        %v1107 = vsel %vm1093, %v924, %v1106
        %v1109 = vadd.f32 %v1103, %v1107
        %1110 = vst.msk [vmem:[%s1102] ss:$2 sm:$0x3] %vm1100, %v1109
        %v1111 = vld [vmem:[#allocation2 + $0x4] sm:$0x1]
        %v1112 = vadd.f32 %v1111, %v997
        %vm1113 = vcmask 253952
        %1114 = vst.msk [vmem:[#allocation2 + $0x4] sm:$0x1] %vm1113, %v1112
        %v1115 = vld [vmem:[#allocation2 + $0x5] sm:$0x1]
        %v1116 = vadd.f32 %v1115, %v1088
        %1117 = vst.msk [vmem:[#allocation2 + $0x5] sm:$0x1] %vm1113, %v1116
      $region44: #{forward.1} parent=35 // pred_fallthru
        _
      // Predicated region
      $region45: #{forward.1} parent=35 // pred_check
        _
      $region46: #{forward.1} parent=35 // pred_check_branch
        %1119 = sbr.rel (%p671) target = $region48
      $region47: #{forward.1} parent=35 // pred_region
        %v1120 = vlaneseq
        %v1121 = vand.u32 %v1120, 127
        %v1122 = vadd.s32 %v1121, 128
        %v1123 = vadd.s32 %v1121, 256
        %vm1124 = vcmp.lt.s32.totalorder %v1121, 256
        %vm1125 = vcmp.lt.s32.totalorder %v1122, 256
        %vm1126 = vcmp.lt.s32.totalorder %v1123, 256
        %v1127 = vsel %vm1124, 0.25, 1.0
        %v1128 = vsel %vm1125, 0.25, 1.0
        %v1129 = vsel %vm1126, 0.25, 1.0
        %v1130 = vld [vmem:[#allocation2] ss:$2 sm:$0x7]
        %v1131 = vmul.f32 %v1127, 0.0051020407
        %v1132 = vmul.f32 %v1128, 0.0051020407
        %v1133 = vmul.f32 %v1129, 0.0051020407
        %v1137 = vrot.slane %v1132, 7
        %v1138 = vrot.slane %v1133, 6
        %vm1139 = vcmask 1040384
        %v1140 = vsel %vm1139, %v1131, %v1137
        %vm1141 = vcmask 1041408
        %v1142 = vsel %vm1141, %v1140, %v1138
        %v1144 = vmul.f32 %v1130, %v1142
        %s1145 = scalar_lea.vmem [#allocation2], 1
        %v1146 = vld [vmem:[%s1145] ss:$2 sm:$0x7]
        %v1147 = vmul.f32 %v1127, %v1127
        %v1148 = vmul.f32 %v1128, %v1128
        %v1149 = vmul.f32 %v1129, %v1129
        %v1150 = vmul.f32 %v1147, 0.0051020407
        %v1151 = vmul.f32 %v1148, 0.0051020407
        %v1152 = vmul.f32 %v1149, 0.0051020407
        %v1156 = vrot.slane %v1151, 7
        %v1157 = vrot.slane %v1152, 6
        %v1158 = vsel %vm1139, %v1150, %v1156
        %v1159 = vsel %vm1141, %v1158, %v1157
        %v1161 = vmul.f32 %v1146, %v1159
        %v1162 = vmul.f32 %v1144, %v1144
        %v1163 = vsub.f32 %v1161, %v1162
        %v1164 = vld [vmem:[%s2] sm:$0x7]
        %v1165 = vadd.f32 %v1163, 1e-05
        %v1166 = vrsqrt.pop %v1165
        %v1167 = vmul.f32 %v1166, %v1165
        %v1168 = vmul.f32 %v1167, %v1166
        %v1169 = vmul.f32 0.5, %v1168
        %v1170 = vsub.f32 1.5, %v1169
        %v1171 = vmul.f32 %v1166, %v1170
        %vm1172 = vweird.f32 %v1165
        %vm1173 = vweird.f32 %v1166
        %vm1174 = vmor %vm1172, %vm1173
        %v1175 = vsel %vm1174, %v1166, %v1171
        %v1176 = vmul.f32 %v1164, %v1175
        %v1180 = vrot.slane %v1128, 7
        %v1181 = vrot.slane %v1129, 6
        %v1182 = vsel %vm1139, %v1127, %v1180
        %v1183 = vsel %vm1141, %v1182, %v1181
        %v1185 = vmul.f32 %v1176, %v1183
        %v1186 = vlaneseq
        %vm1187 = vcmp.ge.s32.totalorder %v1186, 0
        %vm1188 = vcmp.lt.s32.totalorder %v1186, 288
        %vm1189 = vmand %vm1187, %vm1188
        %1190 = vst.msk [vmem:[#allocation3] ss:$2 sm:$0x7] %vm1189, %v1185
        %v1191 = vld [vmem:[%s3] sm:$0x7]
        %v1192 = vmul.f32 %v1144, %v1176
        %v1193 = vsub.f32 %v1191, %v1192
        %s1194 = scalar_lea.vmem [#allocation3], 1
        %1195 = vst.msk [vmem:[%s1194] ss:$2 sm:$0x7] %vm1189, %v1193
      $region48: #{forward.1} parent=35 // pred_fallthru
        _
      %p1196 = scmp.eq.s32.totalorder %s19, 1
      // Predicated region
      $region49: #{forward.1} parent=35 // pred_check
        %p1197 = pneg %p1196
      $region50: #{forward.1} parent=35 // pred_check_branch
        %1199 = sbr.rel (%p1197) target = $region52
      $region51: #{forward.1} parent=35 // pred_region
        %v1200 = vld [vmem:[#allocation3] ss:$2 sm:$0x7]
        %s1201 = scalar_lea.vmem [#allocation3], 1
        %v1202 = vld [vmem:[%s1201] ss:$2 sm:$0x7]
        %v1204 = vperm.slane %v1200, 0
        %v1205 = vperm.slane %v1200, 1
        %v1208 = vmul.f32 %v585, %v1204
        %v1209 = vmul.f32 %v586, %v1205
        %v1210 = vmul.f32 %v587, %v1204
        %v1211 = vmul.f32 %v588, %v1205
        %v1212 = vmul.f32 %v589, %v1204
        %v1213 = vmul.f32 %v590, %v1205
        %v1214 = vmul.f32 %v591, %v1204
        %v1215 = vmul.f32 %v592, %v1205
        %v1216 = vmul.f32 %v593, %v1204
        %v1217 = vmul.f32 %v594, %v1205
        %v1218 = vmul.f32 %v595, %v1204
        %v1219 = vmul.f32 %v596, %v1205
        %v1220 = vmul.f32 %v597, %v1204
        %v1221 = vmul.f32 %v598, %v1205
        %v1222 = vmul.f32 %v599, %v1204
        %v1223 = vmul.f32 %v600, %v1205
        %v1224 = vmul.f32 %v601, %v1204
        %v1225 = vmul.f32 %v602, %v1205
        %v1226 = vmul.f32 %v603, %v1204
        %v1227 = vmul.f32 %v604, %v1205
        %v1228 = vmul.f32 %v605, %v1204
        %v1229 = vmul.f32 %v606, %v1205
        %v1230 = vmul.f32 %v607, %v1204
        %v1231 = vmul.f32 %v608, %v1205
        %v1232 = vmul.f32 %v609, %v1204
        %v1233 = vmul.f32 %v610, %v1205
        %v1234 = vmul.f32 %v611, %v1204
        %v1235 = vmul.f32 %v612, %v1205
        %v1236 = vmul.f32 %v613, %v1204
        %v1237 = vmul.f32 %v614, %v1205
        %v1238 = vmul.f32 %v615, %v1204
        %v1239 = vmul.f32 %v616, %v1205
        %v1240 = vmul.f32 %v617, %v1204
        %v1241 = vmul.f32 %v618, %v1205
        %v1242 = vmul.f32 %v619, %v1204
        %v1243 = vmul.f32 %v620, %v1205
        %v1244 = vmul.f32 %v621, %v1204
        %v1245 = vmul.f32 %v622, %v1205
        %v1246 = vmul.f32 %v623, %v1204
        %v1247 = vmul.f32 %v624, %v1205
        %v1248 = vmul.f32 %v625, %v1204
        %v1249 = vmul.f32 %v626, %v1205
        %v1250 = vmul.f32 %v627, %v1204
        %v1251 = vmul.f32 %v628, %v1205
        %v1252 = vmul.f32 %v629, %v1204
        %v1253 = vmul.f32 %v630, %v1205
        %v1254 = vmul.f32 %v631, %v1204
        %v1255 = vmul.f32 %v632, %v1205
        %v1256 = vmul.f32 %v633, %v1204
        %v1257 = vmul.f32 %v634, %v1205
        %v1258 = vmul.f32 %v635, %v1204
        %v1259 = vmul.f32 %v636, %v1205
        %v1260 = vmul.f32 %v637, %v1204
        %v1261 = vmul.f32 %v638, %v1205
        %v1262 = vmul.f32 %v639, %v1204
        %v1263 = vmul.f32 %v640, %v1205
        %v1265 = vperm.slane %v1202, 0
        %v1266 = vperm.slane %v1202, 1
        %v1269 = vadd.f32 %v1208, %v1265
        %v1270 = vadd.f32 %v1209, %v1266
        %v1271 = vadd.f32 %v1210, %v1265
        %v1272 = vadd.f32 %v1211, %v1266
        %v1273 = vadd.f32 %v1212, %v1265
        %v1274 = vadd.f32 %v1213, %v1266
        %v1275 = vadd.f32 %v1214, %v1265
        %v1276 = vadd.f32 %v1215, %v1266
        %v1277 = vadd.f32 %v1216, %v1265
        %v1278 = vadd.f32 %v1217, %v1266
        %v1279 = vadd.f32 %v1218, %v1265
        %v1280 = vadd.f32 %v1219, %v1266
        %v1281 = vadd.f32 %v1220, %v1265
        %v1282 = vadd.f32 %v1221, %v1266
        %v1283 = vadd.f32 %v1222, %v1265
        %v1284 = vadd.f32 %v1223, %v1266
        %v1285 = vadd.f32 %v1224, %v1265
        %v1286 = vadd.f32 %v1225, %v1266
        %v1287 = vadd.f32 %v1226, %v1265
        %v1288 = vadd.f32 %v1227, %v1266
        %v1289 = vadd.f32 %v1228, %v1265
        %v1290 = vadd.f32 %v1229, %v1266
        %v1291 = vadd.f32 %v1230, %v1265
        %v1292 = vadd.f32 %v1231, %v1266
        %v1293 = vadd.f32 %v1232, %v1265
        %v1294 = vadd.f32 %v1233, %v1266
        %v1295 = vadd.f32 %v1234, %v1265
        %v1296 = vadd.f32 %v1235, %v1266
        %v1297 = vadd.f32 %v1236, %v1265
        %v1298 = vadd.f32 %v1237, %v1266
        %v1299 = vadd.f32 %v1238, %v1265
        %v1300 = vadd.f32 %v1239, %v1266
        %v1301 = vadd.f32 %v1240, %v1265
        %v1302 = vadd.f32 %v1241, %v1266
        %v1303 = vadd.f32 %v1242, %v1265
        %v1304 = vadd.f32 %v1243, %v1266
        %v1305 = vadd.f32 %v1244, %v1265
        %v1306 = vadd.f32 %v1245, %v1266
        %v1307 = vadd.f32 %v1246, %v1265
        %v1308 = vadd.f32 %v1247, %v1266
        %v1309 = vadd.f32 %v1248, %v1265
        %v1310 = vadd.f32 %v1249, %v1266
        %v1311 = vadd.f32 %v1250, %v1265
        %v1312 = vadd.f32 %v1251, %v1266
        %v1313 = vadd.f32 %v1252, %v1265
        %v1314 = vadd.f32 %v1253, %v1266
        %v1315 = vadd.f32 %v1254, %v1265
        %v1316 = vadd.f32 %v1255, %v1266
        %v1317 = vadd.f32 %v1256, %v1265
        %v1318 = vadd.f32 %v1257, %v1266
        %v1319 = vadd.f32 %v1258, %v1265
        %v1320 = vadd.f32 %v1259, %v1266
        %v1321 = vadd.f32 %v1260, %v1265
        %v1322 = vadd.f32 %v1261, %v1266
        %v1323 = vadd.f32 %v1262, %v1265
        %v1324 = vadd.f32 %v1263, %v1266
        %1325 = vst [vmem:[%s245] sm:$0xff] %v1269
        %1326 = vst [vmem:[%s245 + $0x8] sm:$0xff] %v1270
        %1327 = vst [vmem:[%s245 + $0x18] sm:$0x3f] %v1271
        %1328 = vst [vmem:[%s245 + $0x20] sm:$0x3f] %v1272
        %1329 = vst [vmem:[%s245 + $0x30] sm:$0xff] %v1273
        %1330 = vst [vmem:[%s245 + $0x38] sm:$0xff] %v1274
        %1331 = vst [vmem:[%s245 + $0x48] sm:$0x3f] %v1275
        %1332 = vst [vmem:[%s245 + $0x50] sm:$0x3f] %v1276
        %1333 = vst [vmem:[%s245 + $0x60] sm:$0xff] %v1277
        %1334 = vst [vmem:[%s245 + $0x68] sm:$0xff] %v1278
        %1335 = vst [vmem:[%s245 + $0x78] sm:$0x3f] %v1279
        %1336 = vst [vmem:[%s245 + $0x80] sm:$0x3f] %v1280
        %1337 = vst [vmem:[%s245 + $0x90] sm:$0xff] %v1281
        %1338 = vst [vmem:[%s245 + $0x98] sm:$0xff] %v1282
        %1339 = vst [vmem:[%s245 + $0xa8] sm:$0x3f] %v1283
        %1340 = vst [vmem:[%s245 + $0xb0] sm:$0x3f] %v1284
        %1341 = vst [vmem:[%s245 + $0xc0] sm:$0xff] %v1285
        %1342 = vst [vmem:[%s245 + $0xc8] sm:$0xff] %v1286
        %1343 = vst [vmem:[%s245 + $0xd8] sm:$0x3f] %v1287
        %1344 = vst [vmem:[%s245 + $0xe0] sm:$0x3f] %v1288
        %1345 = vst [vmem:[%s245 + $0xf0] sm:$0xff] %v1289
        %1346 = vst [vmem:[%s245 + $0xf8] sm:$0xff] %v1290
        %1347 = vst [vmem:[%s245 + $0x108] sm:$0x3f] %v1291
        %1348 = vst [vmem:[%s245 + $0x110] sm:$0x3f] %v1292
        %1349 = vst [vmem:[%s245 + $0x120] sm:$0xff] %v1293
        %1350 = vst [vmem:[%s245 + $0x128] sm:$0xff] %v1294
        %1351 = vst [vmem:[%s245 + $0x138] sm:$0x3f] %v1295
        %1352 = vst [vmem:[%s245 + $0x140] sm:$0x3f] %v1296
        %1353 = vst [vmem:[%s245 + $0x150] sm:$0xff] %v1297
        %1354 = vst [vmem:[%s245 + $0x158] sm:$0xff] %v1298
        %1355 = vst [vmem:[%s245 + $0x168] sm:$0x3f] %v1299
        %1356 = vst [vmem:[%s245 + $0x170] sm:$0x3f] %v1300
        %1357 = vst [vmem:[%s245 + $0x180] sm:$0xff] %v1301
        %1358 = vst [vmem:[%s245 + $0x188] sm:$0xff] %v1302
        %1359 = vst [vmem:[%s245 + $0x198] sm:$0x3f] %v1303
        %1360 = vst [vmem:[%s245 + $0x1a0] sm:$0x3f] %v1304
        %1361 = vst [vmem:[%s245 + $0x1b0] sm:$0xff] %v1305
        %1362 = vst [vmem:[%s245 + $0x1b8] sm:$0xff] %v1306
        %1363 = vst [vmem:[%s245 + $0x1c8] sm:$0x3f] %v1307
        %1364 = vst [vmem:[%s245 + $0x1d0] sm:$0x3f] %v1308
        %1365 = vst [vmem:[%s245 + $0x1e0] sm:$0xff] %v1309
        %1366 = vst [vmem:[%s245 + $0x1e8] sm:$0xff] %v1310
        %1367 = vst [vmem:[%s245 + $0x1f8] sm:$0x3f] %v1311
        %1368 = vst [vmem:[%s245 + $0x200] sm:$0x3f] %v1312
        %1369 = vst [vmem:[%s245 + $0x210] sm:$0xff] %v1313
        %1370 = vst [vmem:[%s245 + $0x218] sm:$0xff] %v1314
        %1371 = vst [vmem:[%s245 + $0x228] sm:$0x3f] %v1315
        %1372 = vst [vmem:[%s245 + $0x230] sm:$0x3f] %v1316
        %1373 = vst [vmem:[%s245 + $0x240] sm:$0xff] %v1317
        %1374 = vst [vmem:[%s245 + $0x248] sm:$0xff] %v1318
        %1375 = vst [vmem:[%s245 + $0x258] sm:$0x3f] %v1319
        %1376 = vst [vmem:[%s245 + $0x260] sm:$0x3f] %v1320
        %1377 = vst [vmem:[%s245 + $0x270] sm:$0xff] %v1321
        %1378 = vst [vmem:[%s245 + $0x278] sm:$0xff] %v1322
        %1379 = vst [vmem:[%s245 + $0x288] sm:$0x3f] %v1323
        %1380 = vst [vmem:[%s245 + $0x290] sm:$0x3f] %v1324
        %v1381 = vrot.slane %v1200, 2
        %v1382 = vperm.slane %v1381, 0
        %v1384 = vmul.f32 %v641, %v1382
        %v1385 = vmul.f32 %v642, %v1382
        %v1386 = vmul.f32 %v643, %v1382
        %v1387 = vmul.f32 %v644, %v1382
        %v1388 = vmul.f32 %v645, %v1382
        %v1389 = vmul.f32 %v646, %v1382
        %v1390 = vmul.f32 %v647, %v1382
        %v1391 = vmul.f32 %v648, %v1382
        %v1392 = vmul.f32 %v649, %v1382
        %v1393 = vmul.f32 %v650, %v1382
        %v1394 = vmul.f32 %v651, %v1382
        %v1395 = vmul.f32 %v652, %v1382
        %v1396 = vmul.f32 %v653, %v1382
        %v1397 = vmul.f32 %v654, %v1382
        %v1398 = vmul.f32 %v655, %v1382
        %v1399 = vmul.f32 %v656, %v1382
        %v1400 = vmul.f32 %v657, %v1382
        %v1401 = vmul.f32 %v658, %v1382
        %v1402 = vmul.f32 %v659, %v1382
        %v1403 = vmul.f32 %v660, %v1382
        %v1404 = vmul.f32 %v661, %v1382
        %v1405 = vmul.f32 %v662, %v1382
        %v1406 = vmul.f32 %v663, %v1382
        %v1407 = vmul.f32 %v664, %v1382
        %v1408 = vmul.f32 %v665, %v1382
        %v1409 = vmul.f32 %v666, %v1382
        %v1410 = vmul.f32 %v667, %v1382
        %v1411 = vmul.f32 %v668, %v1382
        %v1412 = vrot.slane %v1202, 2
        %v1413 = vperm.slane %v1412, 0
        %v1415 = vadd.f32 %v1384, %v1413
        %v1416 = vadd.f32 %v1385, %v1413
        %v1417 = vadd.f32 %v1386, %v1413
        %v1418 = vadd.f32 %v1387, %v1413
        %v1419 = vadd.f32 %v1388, %v1413
        %v1420 = vadd.f32 %v1389, %v1413
        %v1421 = vadd.f32 %v1390, %v1413
        %v1422 = vadd.f32 %v1391, %v1413
        %v1423 = vadd.f32 %v1392, %v1413
        %v1424 = vadd.f32 %v1393, %v1413
        %v1425 = vadd.f32 %v1394, %v1413
        %v1426 = vadd.f32 %v1395, %v1413
        %v1427 = vadd.f32 %v1396, %v1413
        %v1428 = vadd.f32 %v1397, %v1413
        %v1429 = vadd.f32 %v1398, %v1413
        %v1430 = vadd.f32 %v1399, %v1413
        %v1431 = vadd.f32 %v1400, %v1413
        %v1432 = vadd.f32 %v1401, %v1413
        %v1433 = vadd.f32 %v1402, %v1413
        %v1434 = vadd.f32 %v1403, %v1413
        %v1435 = vadd.f32 %v1404, %v1413
        %v1436 = vadd.f32 %v1405, %v1413
        %v1437 = vadd.f32 %v1406, %v1413
        %v1438 = vadd.f32 %v1407, %v1413
        %v1439 = vadd.f32 %v1408, %v1413
        %v1440 = vadd.f32 %v1409, %v1413
        %v1441 = vadd.f32 %v1410, %v1413
        %v1442 = vadd.f32 %v1411, %v1413
        %vm1443 = vcmask 261120
        %1444 = vst.msk [vmem:[%s245 + $0x10] sm:$0xff] %vm1443, %v1415
        %vm1445 = vcmask 259072
        %1446 = vst.msk [vmem:[%s245 + $0x28] sm:$0x3f] %vm1445, %v1416
        %1447 = vst.msk [vmem:[%s245 + $0x40] sm:$0xff] %vm1443, %v1417
        %1448 = vst.msk [vmem:[%s245 + $0x58] sm:$0x3f] %vm1445, %v1418
        %1449 = vst.msk [vmem:[%s245 + $0x70] sm:$0xff] %vm1443, %v1419
        %1450 = vst.msk [vmem:[%s245 + $0x88] sm:$0x3f] %vm1445, %v1420
        %1451 = vst.msk [vmem:[%s245 + $0xa0] sm:$0xff] %vm1443, %v1421
        %1452 = vst.msk [vmem:[%s245 + $0xb8] sm:$0x3f] %vm1445, %v1422
        %1453 = vst.msk [vmem:[%s245 + $0xd0] sm:$0xff] %vm1443, %v1423
        %1454 = vst.msk [vmem:[%s245 + $0xe8] sm:$0x3f] %vm1445, %v1424
        %1455 = vst.msk [vmem:[%s245 + $0x100] sm:$0xff] %vm1443, %v1425
        %1456 = vst.msk [vmem:[%s245 + $0x118] sm:$0x3f] %vm1445, %v1426
        %1457 = vst.msk [vmem:[%s245 + $0x130] sm:$0xff] %vm1443, %v1427
        %1458 = vst.msk [vmem:[%s245 + $0x148] sm:$0x3f] %vm1445, %v1428
        %1459 = vst.msk [vmem:[%s245 + $0x160] sm:$0xff] %vm1443, %v1429
        %1460 = vst.msk [vmem:[%s245 + $0x178] sm:$0x3f] %vm1445, %v1430
        %1461 = vst.msk [vmem:[%s245 + $0x190] sm:$0xff] %vm1443, %v1431
        %1462 = vst.msk [vmem:[%s245 + $0x1a8] sm:$0x3f] %vm1445, %v1432
        %1463 = vst.msk [vmem:[%s245 + $0x1c0] sm:$0xff] %vm1443, %v1433
        %1464 = vst.msk [vmem:[%s245 + $0x1d8] sm:$0x3f] %vm1445, %v1434
        %1465 = vst.msk [vmem:[%s245 + $0x1f0] sm:$0xff] %vm1443, %v1435
        %1466 = vst.msk [vmem:[%s245 + $0x208] sm:$0x3f] %vm1445, %v1436
        %1467 = vst.msk [vmem:[%s245 + $0x220] sm:$0xff] %vm1443, %v1437
        %1468 = vst.msk [vmem:[%s245 + $0x238] sm:$0x3f] %vm1445, %v1438
        %1469 = vst.msk [vmem:[%s245 + $0x250] sm:$0xff] %vm1443, %v1439
        %1470 = vst.msk [vmem:[%s245 + $0x268] sm:$0x3f] %vm1445, %v1440
        %1471 = vst.msk [vmem:[%s245 + $0x280] sm:$0xff] %vm1443, %v1441
        %1472 = vst.msk [vmem:[%s245 + $0x298] sm:$0x3f] %vm1445, %v1442
      $region52: #{forward.1} parent=35 // pred_fallthru
        _
      %s1473 = smul.u32 %s20, %s19
      %s1474 = smul.u32 14, %s1473
      %p1475 = scmp.lt.s32.totalorder %s1474, 13
      %s1476 = scalar_select %p1475, %s1474, 13
      %s1477 = smul.addr %s1476, 6
      %s1478 = smul.addr %s1477, 8
      %s1479 = scalar_lea.vmem %s4, %s1478
      // Predicated region
      $region53: #{forward.1} parent=35 // pred_check
        %p1480 = pneg %p141
      $region54: #{forward.1} parent=35 // pred_check_branch
        %1482 = sbr.rel (%p1480) target = $region56
      $region55: #{forward.1} parent=35 // pred_region
        %s1483 = smul.u32 %s20, %s19
        %s1484 = smul.u32 14, %s1483
      $region56: #{forward.1} parent=35 // pred_fallthru
        _
    $region36: #{forward.1} parent=5 // pred_fallthru
      _
    %p1485 = scmp.le.s32.totalorder 2, %s10
    // Predicated region
    $region57: #{forward.1} parent=5 // pred_check
      %p1486 = pneg %p1485
    $region58: #{forward.1} parent=5 // pred_check_branch
      %1488 = sbr.rel (%p1486) target = $region60
    $region59: #{forward.1} parent=5 // pred_region
      %s1489 = ssub.s32 %s10, 2
      // Predicated region
      $region61: #{forward.1} parent=59 // pred_check
        %p1490 = pneg %p147
      $region62: #{forward.1} parent=59 // pred_check_branch
        %1492 = sbr.rel (%p1490) target = $region64
      $region63: #{forward.1} parent=59 // pred_region
        %s1493 = smul.u32 %s22, %s21
        %s1494 = smul.u32 14, %s1493
        %p1495 = scmp.lt.s32.totalorder %s1494, 13
        %s1496 = scalar_select %p1495, %s1494, 13
        %s1497 = smul.addr %s1496, 6
        %s1498 = smul.addr %s1497, 8
        %s1499 = scalar_lea.vmem %s4, %s1498
      $region64: #{forward.1} parent=59 // pred_fallthru
        _
    $region60: #{forward.1} parent=5 // pred_fallthru
      _
  $region6: #{forward.1} parent=0 // loop_footer
    %s14 = sadd.s32 1, %s10
  $region7: #{forward.1} parent=0 // loop_footer_branch
    %9 = sbr.rel target = $region3
  $region8: #{forward.1} parent=0 // loop_exit
    _

</llo_original>
